<compile_context>
chip_gen: v5e
topology: v5e:2x2
jax: 0.10.0
libtpu: 0.0.40
codegen_flags: <defaults>
</compile_context>

<pallas_src>
import functools

import jax
import jax.numpy as jnp
from jax.experimental import pallas as pl
from jax.experimental.pallas import tpu as pltpu

BN_EPS = 1e-5


def _round_up(x, m):
    return (x + m - 1) // m * m


def _pick_strip_h(H, W, Cin):
    """Smallest divisor of H with matmul M = strip*W >= 512, within a bf16-patch VMEM budget."""
    divisors = [d for d in range(1, H + 1) if H % d == 0]
    budget = 8 * 1024 * 1024  # bytes of bf16 im2col patch per strip

    def patch_bytes(d):
        return d * W * 9 * Cin * 2

    for d in divisors:
        if d * W >= 512 and patch_bytes(d) <= budget:
            return d
    ok = [d for d in divisors if patch_bytes(d) <= budget]
    return ok[-1] if ok else 1


# --------------------- Kernel 1: conv3x3 + per-strip BN stats --------------------- #
def _conv3x3_stats_kernel(x_ref, w_ref, y_ref, s_ref, xp_ref):
    # x_ref : (1, H, W, Cin)   f32  -- full image of this batch element (resident across strips)
    # w_ref : (9*Cin, Cpad)    bf16 -- im2col-packed weights (grid-invariant)
    # y_ref : (1, SH, W, Cpad) bf16 -- conv output for this H-strip (lane-dense)
    # s_ref : (1, 1, 2, Cpad)  f32  -- per-strip [channel sum, channel sum-of-squares]
    # xp_ref: (H+2, W+2, Cin)  bf16 -- VMEM scratch: zero-haloed image, built once per image
    _, H, W, Cin = x_ref.shape
    SH = y_ref.shape[1]
    Cpad = y_ref.shape[3]
    strip = pl.program_id(1)

    # Build the haloed image exactly once per image (strip axis is "arbitrary", so the scratch
    # persists across strips and is rebuilt only when the batch element changes).
    @pl.when(strip == 0)
    def _build_halo():
        xp_ref[...] = jnp.zeros(xp_ref.shape, xp_ref.dtype)
        xp_ref[1:H + 1, 1:W + 1, :] = x_ref[0].astype(jnp.bfloat16)

    row0 = strip * SH
    if SH % 8 == 0:
        row0 = pl.multiple_of(row0, 8)

    # im2col patch for this strip: (SH*W, 9*Cin).
    taps = []
    for kh in range(3):
        rows = xp_ref[pl.ds(row0 + kh, SH), :, :]          # (SH, W+2, Cin)
        for kw in range(3):
            taps.append(rows[:, kw:kw + W, :])              # (SH, W, Cin)
    patch = jnp.concatenate(taps, axis=-1).reshape(SH * W, 9 * Cin)

    # Single fused MXU matmul: bf16 x bf16 -> f32 accumulate.
    acc = jnp.dot(patch, w_ref[...], preferred_element_type=jnp.float32)   # (SH*W, Cpad)

    y_ref[...] = acc.astype(y_ref.dtype).reshape(1, SH, W, Cpad)

    # BN statistics epilogue in f32 from the accumulator (no re-read of the activation).
    csum = jnp.sum(acc, axis=0, keepdims=True)              # (1, Cpad)
    csq = jnp.sum(acc * acc, axis=0, keepdims=True)         # (1, Cpad)
    s_ref[...] = jnp.concatenate([csum, csq], axis=0).reshape(1, 1, 2, Cpad)


def conv3x3_bn_stats(x_nhwc, w2d, *, strip_h):
    N, H, W, Cin = x_nhwc.shape
    Cpad = w2d.shape[1]
    assert H % strip_h == 0
    n_strips = H // strip_h

    flops = 2 * N * H * W * (9 * Cin) * Cpad
    bytes_accessed = (N * H * W * Cin * 4            # x (f32)
                      + 9 * Cin * Cpad * 2           # weights (bf16)
                      + N * H * W * Cpad * 2         # y (bf16)
                      + N * n_strips * 2 * Cpad * 4)  # stats (f32)

    return pl.pallas_call(
        _conv3x3_stats_kernel,
        out_shape=(
            jax.ShapeDtypeStruct((N, H, W, Cpad), jnp.bfloat16),
            jax.ShapeDtypeStruct((N, n_strips, 2, Cpad), jnp.float32),
        ),
        grid=(N, n_strips),
        in_specs=[
            pl.BlockSpec((1, H, W, Cin), lambda n, i: (n, 0, 0, 0)),
            pl.BlockSpec(w2d.shape, lambda n, i: (0, 0)),
        ],
        out_specs=(
            pl.BlockSpec((1, strip_h, W, Cpad), lambda n, i: (n, i, 0, 0)),
            pl.BlockSpec((1, 1, 2, Cpad), lambda n, i: (n, i, 0, 0)),
        ),
        scratch_shapes=[pltpu.VMEM((H + 2, W + 2, Cin), jnp.bfloat16)],
        compiler_params=pltpu.CompilerParams(
            # batch parallel (megacore shards whole images), strips arbitrary (scratch carries
            # the per-image halo across strips; never split across cores).
            dimension_semantics=("parallel", "arbitrary"),
            vmem_limit_bytes=48 * 1024 * 1024,
        ),
        cost_estimate=pl.CostEstimate(flops=flops, transcendentals=0,
                                      bytes_accessed=bytes_accessed),
    )(x_nhwc, w2d)


# ------------------------ Kernel 2: BN apply (+ ReLU), tiled ---------------------- #
def _bn_apply_kernel(y_ref, scale_ref, shift_ref, o_ref, *, relu):
    out = y_ref[...].astype(jnp.float32) * scale_ref[...] + shift_ref[...]
    if relu:
        out = jnp.maximum(out, 0.0)
    o_ref[...] = out


def _pick_tile_rows(rows, lane):
    # Target ~1 MiB f32 blocks (lane-dense, large unmasked DMAs), rows a multiple of 8.
    cap = max(8, (1 << 18) // lane)          # ~256K f32 elements per block
    cap = max(8, cap - cap % 8)
    if rows <= cap:
        return rows                          # full extent (allowed even if not %8)
    d = cap
    while d >= 8:
        if rows % d == 0:
            return d
        d -= 8
    return cap                               # non-dividing: cdiv grid, clipped tail writes


def bn_apply(y2d, scale, shift, *, relu):
    rows, lane = y2d.shape
    tile_rows = _pick_tile_rows(rows, lane)
    grid = (pl.cdiv(rows, tile_rows),)
    flops = 3 * rows * lane
    bytes_accessed = rows * lane * (2 + 4) + 2 * lane * 4
    return pl.pallas_call(
        functools.partial(_bn_apply_kernel, relu=relu),
        out_shape=jax.ShapeDtypeStruct((rows, lane), jnp.float32),
        grid=grid,
        in_specs=[
            pl.BlockSpec((tile_rows, lane), lambda m: (m, 0)),
            pl.BlockSpec((1, lane), lambda m: (0, 0)),
            pl.BlockSpec((1, lane), lambda m: (0, 0)),
        ],
        out_specs=pl.BlockSpec((tile_rows, lane), lambda m: (m, 0)),
        compiler_params=pltpu.CompilerParams(
            dimension_semantics=("parallel",),
        ),
        cost_estimate=pl.CostEstimate(flops=flops, transcendentals=0,
                                      bytes_accessed=bytes_accessed),
    )(y2d, scale, shift)


# --------------------------------- Module wrapper --------------------------------- #
def conv_bn(x_nchw, w_oihw, gamma, beta, *, relu=True, strip_h=None):
    """ConvBnReLU / ConvBn forward: 3x3 stride-1 pad-1 bias-free conv -> training-mode BN (-> ReLU)."""
    N, Cin, H, W = x_nchw.shape
    Cout = w_oihw.shape[0]
    Cpad = _round_up(Cout, 128)
    if strip_h is None:
        strip_h = _pick_strip_h(H, W, Cin)

    # NCHW->NHWC once at the PyTorch interface; all kernel work keeps channels on the lanes.
    x_nhwc = jnp.transpose(x_nchw, (0, 2, 3, 1)).astype(jnp.float32)

    # Pack 3x3 weights once into a dense (9*Cin, Cpad) bf16 slab (im2col layout kh,kw,ci).
    w2d = jnp.transpose(w_oihw, (2, 3, 1, 0)).reshape(9 * Cin, Cout)
    w2d = jnp.pad(w2d, ((0, 0), (0, Cpad - Cout))).astype(jnp.bfloat16)

    y, stats = conv3x3_bn_stats(x_nhwc, w2d, strip_h=strip_h)

    # Reduce the tiny per-strip stats and fold BN into one scale/shift per channel
    # (biased batch variance, like nn.BatchNorm2d.forward in training mode).
    m = N * H * W
    tot = jnp.sum(stats, axis=(0, 1))                                # (2, Cpad)
    mean = tot[0] / m
    var = jnp.maximum(tot[1] / m - mean * mean, 0.0)
    inv = jax.lax.rsqrt(var + BN_EPS)
    gamma_p = jnp.pad(gamma.astype(jnp.float32), (0, Cpad - Cout))
    beta_p = jnp.pad(beta.astype(jnp.float32), (0, Cpad - Cout))
    scale_v = gamma_p * inv
    shift_v = beta_p - mean * scale_v

    # Lane-widened view: fold R rows into the lane axis (R*Cpad lanes -> wide unmasked stores).
    M = N * H * W
    R = 8 if M % 8 == 0 else 1
    lane = R * Cpad
    y2d = y.reshape(M // R, lane)
    scale_t = jnp.tile(scale_v, R).reshape(1, lane)
    shift_t = jnp.tile(shift_v, R).reshape(1, lane)

    o2d = bn_apply(y2d, scale_t, shift_t, relu=relu)

    # Module-boundary layout restore (chained ConvBn blocks should instead keep NHWC+Cpad).
    out_nhwc = o2d.reshape(N, H, W, Cpad)[..., :Cout]
    return jnp.transpose(out_nhwc, (0, 3, 1, 2))                     # back to NCHW


def conv_bn_relu(x_nchw, w_oihw, gamma, beta):
    return conv_bn(x_nchw, w_oihw, gamma, beta, relu=True)


# ------------------------------ pure-JAX reference -------------------------------- #
def _reference(x, w, gamma, beta, relu=True):
    y = jax.lax.conv_general_dilated(
        x, w, window_strides=(1, 1), padding=((1, 1), (1, 1)),
        dimension_numbers=("NCHW", "OIHW", "NCHW"))
    mean = jnp.mean(y, axis=(0, 2, 3), keepdims=True)
    var = jnp.mean((y - mean) ** 2, axis=(0, 2, 3), keepdims=True)
    yn = (y - mean) * jax.lax.rsqrt(var + BN_EPS)
    yn = yn * gamma.reshape(1, -1, 1, 1) + beta.reshape(1, -1, 1, 1)
    return jnp.maximum(yn, 0.0) if relu else yn


if __name__ == "__main__":
    key = jax.random.PRNGKey(0)
    k_x, k_w = jax.random.split(key)

    N, Cin, Cout, H, W = 2, 4, 8, 16, 16

    x = jax.random.normal(k_x, (N, Cin, H, W), dtype=jnp.float32)
    # Conv2d weight (Cout, Cin, 3, 3), no bias.
    w = 0.1 * jax.random.normal(k_w, (Cout, Cin, 3, 3), dtype=jnp.float32)
    # BatchNorm2d affine params at PyTorch init values: weight=1, bias=0.
    gamma = jnp.ones((Cout,), dtype=jnp.float32)
    beta = jnp.zeros((Cout,), dtype=jnp.float32)

    out = jax.jit(conv_bn_relu)(x, w, gamma, beta)
    jax.block_until_ready(out)

    assert out.shape == (N, Cout, H, W)
    assert bool(jnp.all(out >= 0.0))

    # Loose tolerance: kernel uses bf16 MXU operands + bf16 conv intermediate, f32 accumulation.
    ref = _reference(x, w, gamma, beta, relu=True)
    assert bool(jnp.allclose(out, ref, atol=5e-2, rtol=5e-2)), float(jnp.max(jnp.abs(out - ref)))

    print("KERNEL_OK")
</pallas_src>

<mosaic_0001>
module attributes {stable_mosaic.version = 11 : i64} {
  func.func @_conv3x3_stats_kernel(%arg0: i32, %arg1: i32, %arg2: memref<1x16x16x4xf32, #tpu.memory_space<vmem>>, %arg3: memref<36x128xbf16, #tpu.memory_space<vmem>>, %arg4: memref<1x16x16x128xbf16, #tpu.memory_space<vmem>>, %arg5: memref<1x1x2x128xf32, #tpu.memory_space<vmem>>, %arg6: memref<18x18x4xbf16, #tpu.memory_space<vmem>>) attributes {dimension_semantics = [#tpu.dimension_semantics<parallel>, #tpu.dimension_semantics<arbitrary>], iteration_bounds = array<i64: 2, 1>, scalar_prefetch = 0 : i64, scratch_operands = 1 : i64, tpu.core_type = #tpu.core_type<tc>, window_params = [{transform_indices = @transform_0, window_bounds = array<i64: 1, 16, 16, 4>}, {pipeline_mode = #tpu.pipeline_mode<synchronous>, transform_indices = @transform_1, window_bounds = array<i64: 36, 128>}, {transform_indices = @transform_2, window_bounds = array<i64: 1, 16, 16, 128>}, {transform_indices = @transform_3, window_bounds = array<i64: 1, 1, 2, 128>}]} {
    %c0_i32 = arith.constant 0 : i32
    %0 = arith.cmpi eq, %arg1, %c0_i32 : i32
    %1 = arith.extui %0 : i1 to i32
    %c0_i32_0 = arith.constant 0 : i32
    %2 = arith.cmpi ne, %1, %c0_i32_0 : i32
    scf.if %2 {
      %cst_19 = arith.constant 0.000000e+00 : bf16
      %38 = vector.broadcast %cst_19 : bf16 to vector<18x18x4xbf16>
      %c0_20 = arith.constant 0 : index
      %c0_21 = arith.constant 0 : index
      %c0_22 = arith.constant 0 : index
      %39 = vector.load %arg6[%c0_20, %c0_21, %c0_22] : memref<18x18x4xbf16, #tpu.memory_space<vmem>>, vector<18x18x4xbf16>
      tpu.vector_store %arg6[%c0_20, %c0_21, %c0_22], %38 {strides = array<i32>} : memref<18x18x4xbf16, #tpu.memory_space<vmem>>, vector<18x18x4xbf16>,
      %c0_23 = arith.constant 0 : index
      %c0_24 = arith.constant 0 : index
      %c0_25 = arith.constant 0 : index
      %c0_26 = arith.constant 0 : index
      %40 = vector.load %arg2[%c0_23, %c0_24, %c0_25, %c0_26] : memref<1x16x16x4xf32, #tpu.memory_space<vmem>>, vector<1x16x16x4xf32>
      %41 = vector.shape_cast %40 : vector<1x16x16x4xf32> to vector<16x16x4xf32>
      %42 = arith.truncf %41 : vector<16x16x4xf32> to vector<16x16x4xbf16>
      %c1 = arith.constant 1 : index
      %c1_27 = arith.constant 1 : index
      %c0_28 = arith.constant 0 : index
      %43 = vector.load %arg6[%c1, %c1_27, %c0_28] : memref<18x18x4xbf16, #tpu.memory_space<vmem>>, vector<16x16x4xbf16>
      tpu.vector_store %arg6[%c1, %c1_27, %c0_28], %42 {strides = array<i32>} : memref<18x18x4xbf16, #tpu.memory_space<vmem>>, vector<16x16x4xbf16>,
    } else {
    }
    %c16_i32 = arith.constant 16 : i32
    %3 = arith.muli %arg1, %c16_i32 : i32
    %4 = tpu.assume_multiple %3, 8 : i32
    %c0_i32_1 = arith.constant 0 : i32
    %5 = arith.addi %4, %c0_i32_1 : i32
    %6 = arith.index_cast %5 : i32 to index
    %c0 = arith.constant 0 : index
    %c0_2 = arith.constant 0 : index
    %7 = vector.load %arg6[%6, %c0, %c0_2] : memref<18x18x4xbf16, #tpu.memory_space<vmem>>, vector<16x18x4xbf16>
    %8 = vector.extract_strided_slice %7 {offsets = [0, 0, 0], sizes = [16, 16, 4], strides = [1, 1, 1]} : vector<16x18x4xbf16> to vector<16x16x4xbf16>
    %9 = vector.extract_strided_slice %7 {offsets = [0, 1, 0], sizes = [16, 16, 4], strides = [1, 1, 1]} : vector<16x18x4xbf16> to vector<16x16x4xbf16>
    %10 = vector.extract_strided_slice %7 {offsets = [0, 2, 0], sizes = [16, 16, 4], strides = [1, 1, 1]} : vector<16x18x4xbf16> to vector<16x16x4xbf16>
    %c1_i32 = arith.constant 1 : i32
    %11 = arith.addi %4, %c1_i32 : i32
    %12 = arith.index_cast %11 : i32 to index
    %c0_3 = arith.constant 0 : index
    %c0_4 = arith.constant 0 : index
    %13 = vector.load %arg6[%12, %c0_3, %c0_4] : memref<18x18x4xbf16, #tpu.memory_space<vmem>>, vector<16x18x4xbf16>
    %14 = vector.extract_strided_slice %13 {offsets = [0, 0, 0], sizes = [16, 16, 4], strides = [1, 1, 1]} : vector<16x18x4xbf16> to vector<16x16x4xbf16>
    %15 = vector.extract_strided_slice %13 {offsets = [0, 1, 0], sizes = [16, 16, 4], strides = [1, 1, 1]} : vector<16x18x4xbf16> to vector<16x16x4xbf16>
    %16 = vector.extract_strided_slice %13 {offsets = [0, 2, 0], sizes = [16, 16, 4], strides = [1, 1, 1]} : vector<16x18x4xbf16> to vector<16x16x4xbf16>
    %c2_i32 = arith.constant 2 : i32
    %17 = arith.addi %4, %c2_i32 : i32
    %18 = arith.index_cast %17 : i32 to index
    %c0_5 = arith.constant 0 : index
    %c0_6 = arith.constant 0 : index
    %19 = vector.load %arg6[%18, %c0_5, %c0_6] : memref<18x18x4xbf16, #tpu.memory_space<vmem>>, vector<16x18x4xbf16>
    %20 = vector.extract_strided_slice %19 {offsets = [0, 0, 0], sizes = [16, 16, 4], strides = [1, 1, 1]} : vector<16x18x4xbf16> to vector<16x16x4xbf16>
    %21 = vector.extract_strided_slice %19 {offsets = [0, 1, 0], sizes = [16, 16, 4], strides = [1, 1, 1]} : vector<16x18x4xbf16> to vector<16x16x4xbf16>
    %22 = vector.extract_strided_slice %19 {offsets = [0, 2, 0], sizes = [16, 16, 4], strides = [1, 1, 1]} : vector<16x18x4xbf16> to vector<16x16x4xbf16>
    %23 = tpu.concatenate %8, %9, %10, %14, %15, %16, %20, %21, %22 in 2 : vector<16x16x4xbf16>, vector<16x16x4xbf16>, vector<16x16x4xbf16>, vector<16x16x4xbf16>, vector<16x16x4xbf16>, vector<16x16x4xbf16>, vector<16x16x4xbf16>, vector<16x16x4xbf16>, vector<16x16x4xbf16> -> vector<16x16x36xbf16>
    %24 = vector.shape_cast %23 : vector<16x16x36xbf16> to vector<256x36xbf16>
    %c0_7 = arith.constant 0 : index
    %c0_8 = arith.constant 0 : index
    %25 = vector.load %arg3[%c0_7, %c0_8] : memref<36x128xbf16, #tpu.memory_space<vmem>>, vector<36x128xbf16>
    %cst = arith.constant dense<0.000000e+00> : vector<256x128xf32>
    %26 = tpu.matmul %24, %25, %cst {dimension_numbers = #tpu.dot_dimension_numbers<[1], [0], [0], [1], [0, 0, 1, 1], [], []>} : vector<256x36xbf16>, vector<36x128xbf16>, vector<256x128xf32> -> vector<256x128xf32>
    %27 = arith.truncf %26 : vector<256x128xf32> to vector<256x128xbf16>
    %28 = vector.shape_cast %27 : vector<256x128xbf16> to vector<1x16x16x128xbf16>
    %c0_9 = arith.constant 0 : index
    %c0_10 = arith.constant 0 : index
    %c0_11 = arith.constant 0 : index
    %c0_12 = arith.constant 0 : index
    %29 = vector.load %arg4[%c0_9, %c0_10, %c0_11, %c0_12] : memref<1x16x16x128xbf16, #tpu.memory_space<vmem>>, vector<1x16x16x128xbf16>
    tpu.vector_store %arg4[%c0_9, %c0_10, %c0_11, %c0_12], %28 {strides = array<i32>} : memref<1x16x16x128xbf16, #tpu.memory_space<vmem>>, vector<1x16x16x128xbf16>,
    %cst_13 = arith.constant dense<0.000000e+00> : vector<128xf32>
    %30 = vector.multi_reduction <add>, %26, %cst_13 [0] : vector<256x128xf32> to vector<128xf32>
    %31 = vector.shape_cast %30 : vector<128xf32> to vector<1x128xf32>
    %32 = arith.mulf %26, %26 : vector<256x128xf32>
    %cst_14 = arith.constant dense<0.000000e+00> : vector<128xf32>
    %33 = vector.multi_reduction <add>, %32, %cst_14 [0] : vector<256x128xf32> to vector<128xf32>
    %34 = vector.shape_cast %33 : vector<128xf32> to vector<1x128xf32>
    %35 = tpu.concatenate %31, %34 in 0 : vector<1x128xf32>, vector<1x128xf32> -> vector<2x128xf32>
    %36 = vector.shape_cast %35 : vector<2x128xf32> to vector<1x1x2x128xf32>
    %c0_15 = arith.constant 0 : index
    %c0_16 = arith.constant 0 : index
    %c0_17 = arith.constant 0 : index
    %c0_18 = arith.constant 0 : index
    %37 = vector.load %arg5[%c0_15, %c0_16, %c0_17, %c0_18] : memref<1x1x2x128xf32, #tpu.memory_space<vmem>>, vector<1x1x2x128xf32>
    tpu.vector_store %arg5[%c0_15, %c0_16, %c0_17, %c0_18], %36 {strides = array<i32>} : memref<1x1x2x128xf32, #tpu.memory_space<vmem>>, vector<1x1x2x128xf32>,
    return
  }
  func.func @transform_0(%arg0: i32, %arg1: i32) -> (i32, i32, i32, i32) {
    %c0_i32 = arith.constant 0 : i32
    %c0_i32_0 = arith.constant 0 : i32
    %c0_i32_1 = arith.constant 0 : i32
    %c0_i32_2 = arith.constant 0 : i32
    return %arg0, %c0_i32, %c0_i32_0, %c0_i32_1 : i32, i32, i32, i32
  }
  func.func @transform_1(%arg0: i32, %arg1: i32) -> (i32, i32) {
    %c0_i32 = arith.constant 0 : i32
    %c0_i32_0 = arith.constant 0 : i32
    %c0_i32_1 = arith.constant 0 : i32
    return %c0_i32, %c0_i32_0 : i32, i32
  }
  func.func @transform_2(%arg0: i32, %arg1: i32) -> (i32, i32, i32, i32) {
    %c0_i32 = arith.constant 0 : i32
    %c0_i32_0 = arith.constant 0 : i32
    %c0_i32_1 = arith.constant 0 : i32
    return %arg0, %arg1, %c0_i32, %c0_i32_0 : i32, i32, i32, i32
  }
  func.func @transform_3(%arg0: i32, %arg1: i32) -> (i32, i32, i32, i32) {
    %c0_i32 = arith.constant 0 : i32
    %c0_i32_0 = arith.constant 0 : i32
    %c0_i32_1 = arith.constant 0 : i32
    return %arg0, %arg1, %c0_i32, %c0_i32_0 : i32, i32, i32, i32
  }
}

module attributes {stable_mosaic.version = 11 : i64} {
  func.func @_bn_apply_kernel(%arg0: i32, %arg1: memref<64x1024xbf16, #tpu.memory_space<vmem>>, %arg2: memref<1x1024xf32, #tpu.memory_space<vmem>>, %arg3: memref<1x1024xf32, #tpu.memory_space<vmem>>, %arg4: memref<64x1024xf32, #tpu.memory_space<vmem>>) attributes {dimension_semantics = [#tpu.dimension_semantics<parallel>], iteration_bounds = array<i64: 1>, scalar_prefetch = 0 : i64, scratch_operands = 0 : i64, tpu.core_type = #tpu.core_type<tc>, window_params = [{transform_indices = @transform_0, window_bounds = array<i64: 64, 1024>}, {pipeline_mode = #tpu.pipeline_mode<synchronous>, transform_indices = @transform_1, window_bounds = array<i64: 1, 1024>}, {pipeline_mode = #tpu.pipeline_mode<synchronous>, transform_indices = @transform_2, window_bounds = array<i64: 1, 1024>}, {transform_indices = @transform_3, window_bounds = array<i64: 64, 1024>}]} {
    %c0 = arith.constant 0 : index
    %c0_0 = arith.constant 0 : index
    %0 = vector.load %arg1[%c0, %c0_0] : memref<64x1024xbf16, #tpu.memory_space<vmem>>, vector<64x1024xbf16>
    %1 = arith.extf %0 : vector<64x1024xbf16> to vector<64x1024xf32>
    %c0_1 = arith.constant 0 : index
    %c0_2 = arith.constant 0 : index
    %2 = vector.load %arg2[%c0_1, %c0_2] : memref<1x1024xf32, #tpu.memory_space<vmem>>, vector<1x1024xf32>
    %3 = vector.broadcast %2 : vector<1x1024xf32> to vector<64x1024xf32>
    %4 = arith.mulf %1, %3 : vector<64x1024xf32>
    %c0_3 = arith.constant 0 : index
    %c0_4 = arith.constant 0 : index
    %5 = vector.load %arg3[%c0_3, %c0_4] : memref<1x1024xf32, #tpu.memory_space<vmem>>, vector<1x1024xf32>
    %6 = vector.broadcast %5 : vector<1x1024xf32> to vector<64x1024xf32>
    %7 = arith.addf %4, %6 : vector<64x1024xf32>
    %cst = arith.constant 0.000000e+00 : f32
    %8 = vector.broadcast %cst : f32 to vector<64x1024xf32>
    %9 = arith.maximumf %7, %8 : vector<64x1024xf32>
    %c0_5 = arith.constant 0 : index
    %c0_6 = arith.constant 0 : index
    %10 = vector.load %arg4[%c0_5, %c0_6] : memref<64x1024xf32, #tpu.memory_space<vmem>>, vector<64x1024xf32>
    tpu.vector_store %arg4[%c0_5, %c0_6], %9 {strides = array<i32>} : memref<64x1024xf32, #tpu.memory_space<vmem>>, vector<64x1024xf32>,
    return
  }
  func.func @transform_0(%arg0: i32) -> (i32, i32) {
    %c0_i32 = arith.constant 0 : i32
    %c0_i32_0 = arith.constant 0 : i32
    return %arg0, %c0_i32 : i32, i32
  }
  func.func @transform_1(%arg0: i32) -> (i32, i32) {
    %c0_i32 = arith.constant 0 : i32
    %c0_i32_0 = arith.constant 0 : i32
    %c0_i32_1 = arith.constant 0 : i32
    return %c0_i32, %c0_i32_0 : i32, i32
  }
  func.func @transform_2(%arg0: i32) -> (i32, i32) {
    %c0_i32 = arith.constant 0 : i32
    %c0_i32_0 = arith.constant 0 : i32
    %c0_i32_1 = arith.constant 0 : i32
    return %c0_i32, %c0_i32_0 : i32, i32
  }
  func.func @transform_3(%arg0: i32) -> (i32, i32) {
    %c0_i32 = arith.constant 0 : i32
    %c0_i32_0 = arith.constant 0 : i32
    return %arg0, %c0_i32 : i32, i32
  }
}

</mosaic_0001>

<llo_original>
// kernel: tile.18
$region0: #{tile.18}
  #allocation0 [shape = 's32[1]{0}', space=sflag, size = 0x4, scoped, tag = 'scoped memory for tile.18']
  %s0 = inlined_call_operand.vmem [shape: f32[128], index: 0, kind: input, shape index: {}]
  %s1 = inlined_call_operand.vmem [shape: f32[8,128], index: 1, kind: output, shape index: {}]
  // Predicated region
  $region2: #{tile.18} parent=0 // pred_check
    _
  $region3: #{tile.18} parent=0 // pred_check_branch
    %3 = sbr.rel (0) target = $region5
  $region4: #{tile.18} parent=0 // pred_region
    _
  $region5: #{tile.18} parent=0 // pred_fallthru
    _
  %v4 = vld [vmem:[%s0] ss:$0 sm:$0xff]
  %5 = vst [vmem:[%s1] sm:$0xff] %v4

// kernel: conv_bn_relu.3
$region0: #{conv_bn_relu.3}
  #allocation0 [shape = 'u32[]', space=smem, size = 0x4, offset = 0x4, fixed_abs, tag = 'smem constant byte address 0x4 - core index']
  #allocation1 [shape = 'u32[72,128]{1,0:T(1,128)}', space=vmem, size = 0x9000, scoped, tag = 'internal scratch']
  %s0 = inlined_call_operand.vmem [shape: bf16[64,1024], index: 0, kind: input, shape index: {}]
  %s1 = inlined_call_operand.vmem [shape: f32[1,1024], index: 1, kind: input, shape index: {}]
  %s2 = inlined_call_operand.vmem [shape: f32[1,1024], index: 2, kind: input, shape index: {}]
  %s3 = inlined_call_operand.vmem [shape: f32[64,1024], index: 3, kind: output, shape index: {}]
  %s4 = sld [smem:[#allocation0]]
  $region22: #{conv_bn_relu.3} parent=0
    _
  %s6 = ssub.s32 1, %s4
  %s7 = scalar_select 0, %s6, %s4
  // Predicated region
  $region2: #{conv_bn_relu.3} parent=0 // pred_check
    _
  $region3: #{conv_bn_relu.3} parent=0 // pred_check_branch
    %9 = sbr.rel (0) target = $region5
  $region4: #{conv_bn_relu.3} parent=0 // pred_region
    _
  $region5: #{conv_bn_relu.3} parent=0 // pred_fallthru
    _
  // Predicated region
  $region6: #{conv_bn_relu.3} parent=0 // pred_check
    _
  $region7: #{conv_bn_relu.3} parent=0 // pred_check_branch
    %11 = sbr.rel (0) target = $region9
  $region8: #{conv_bn_relu.3} parent=0 // pred_region
    _
  $region9: #{conv_bn_relu.3} parent=0 // pred_fallthru
    _
  // Predicated region
  $region10: #{conv_bn_relu.3} parent=0 // pred_check
    _
  $region11: #{conv_bn_relu.3} parent=0 // pred_check_branch
    %13 = sbr.rel (0) target = $region13
  $region12: #{conv_bn_relu.3} parent=0 // pred_region
    _
  $region13: #{conv_bn_relu.3} parent=0 // pred_fallthru
    _
  %v14 = vld [vmem:[%s0] sm:$0xff]
  %v15 = vld [vmem:[%s0 + $0x8] sm:$0xff]
  %v16 = vld [vmem:[%s0 + $0x10] sm:$0xff]
  %v17 = vld [vmem:[%s0 + $0x18] sm:$0xff]
  %v18 = vld [vmem:[%s0 + $0x20] sm:$0xff]
  %v19 = vld [vmem:[%s0 + $0x28] sm:$0xff]
  %v20 = vld [vmem:[%s0 + $0x30] sm:$0xff]
  %v21 = vld [vmem:[%s0 + $0x38] sm:$0xff]
  %v22 = vld [vmem:[%s0 + $0x40] sm:$0xff]
  %v23 = vld [vmem:[%s0 + $0x48] sm:$0xff]
  %v24 = vld [vmem:[%s0 + $0x50] sm:$0xff]
  %v25 = vld [vmem:[%s0 + $0x58] sm:$0xff]
  %v26 = vld [vmem:[%s0 + $0x60] sm:$0xff]
  %v27 = vld [vmem:[%s0 + $0x68] sm:$0xff]
  %v28 = vld [vmem:[%s0 + $0x70] sm:$0xff]
  %v29 = vld [vmem:[%s0 + $0x78] sm:$0xff]
  %v30 = vld [vmem:[%s0 + $0x80] sm:$0xff]
  %v31 = vld [vmem:[%s0 + $0x88] sm:$0xff]
  %v32 = vld [vmem:[%s0 + $0x90] sm:$0xff]
  %v33 = vld [vmem:[%s0 + $0x98] sm:$0xff]
  %v34 = vld [vmem:[%s0 + $0xa0] sm:$0xff]
  %v35 = vld [vmem:[%s0 + $0xa8] sm:$0xff]
  %v36 = vld [vmem:[%s0 + $0xb0] sm:$0xff]
  %v37 = vld [vmem:[%s0 + $0xb8] sm:$0xff]
  %v38 = vld [vmem:[%s0 + $0xc0] sm:$0xff]
  %v39 = vld [vmem:[%s0 + $0xc8] sm:$0xff]
  %v40 = vld [vmem:[%s0 + $0xd0] sm:$0xff]
  %v41 = vld [vmem:[%s0 + $0xd8] sm:$0xff]
  %v42 = vld [vmem:[%s0 + $0xe0] sm:$0xff]
  %v43 = vld [vmem:[%s0 + $0xe8] sm:$0xff]
  %v44 = vld [vmem:[%s0 + $0xf0] sm:$0xff]
  %v45 = vld [vmem:[%s0 + $0xf8] sm:$0xff]
  %v46 = vunpack.c.l.bf16 %v14
  %v47 = vunpack.c.h.bf16 %v14
  %v48 = vunpack.c.l.bf16 %v15
  %v49 = vunpack.c.h.bf16 %v15
  %v50 = vunpack.c.l.bf16 %v16
  %v51 = vunpack.c.h.bf16 %v16
  %v52 = vunpack.c.l.bf16 %v17
  %v53 = vunpack.c.h.bf16 %v17
  %v54 = vunpack.c.l.bf16 %v18
  %v55 = vunpack.c.h.bf16 %v18
  %v56 = vunpack.c.l.bf16 %v19
  %v57 = vunpack.c.h.bf16 %v19
  %v58 = vunpack.c.l.bf16 %v20
  %v59 = vunpack.c.h.bf16 %v20
  %v60 = vunpack.c.l.bf16 %v21
  %v61 = vunpack.c.h.bf16 %v21
  %v62 = vunpack.c.l.bf16 %v22
  %v63 = vunpack.c.h.bf16 %v22
  %v64 = vunpack.c.l.bf16 %v23
  %v65 = vunpack.c.h.bf16 %v23
  %v66 = vunpack.c.l.bf16 %v24
  %v67 = vunpack.c.h.bf16 %v24
  %v68 = vunpack.c.l.bf16 %v25
  %v69 = vunpack.c.h.bf16 %v25
  %v70 = vunpack.c.l.bf16 %v26
  %v71 = vunpack.c.h.bf16 %v26
  %v72 = vunpack.c.l.bf16 %v27
  %v73 = vunpack.c.h.bf16 %v27
  %v74 = vunpack.c.l.bf16 %v28
  %v75 = vunpack.c.h.bf16 %v28
  %v76 = vunpack.c.l.bf16 %v29
  %v77 = vunpack.c.h.bf16 %v29
  %v78 = vunpack.c.l.bf16 %v30
  %v79 = vunpack.c.h.bf16 %v30
  %v80 = vunpack.c.l.bf16 %v31
  %v81 = vunpack.c.h.bf16 %v31
  %v82 = vunpack.c.l.bf16 %v32
  %v83 = vunpack.c.h.bf16 %v32
  %v84 = vunpack.c.l.bf16 %v33
  %v85 = vunpack.c.h.bf16 %v33
  %v86 = vunpack.c.l.bf16 %v34
  %v87 = vunpack.c.h.bf16 %v34
  %v88 = vunpack.c.l.bf16 %v35
  %v89 = vunpack.c.h.bf16 %v35
  %v90 = vunpack.c.l.bf16 %v36
  %v91 = vunpack.c.h.bf16 %v36
  %v92 = vunpack.c.l.bf16 %v37
  %v93 = vunpack.c.h.bf16 %v37
  %v94 = vunpack.c.l.bf16 %v38
  %v95 = vunpack.c.h.bf16 %v38
  %v96 = vunpack.c.l.bf16 %v39
  %v97 = vunpack.c.h.bf16 %v39
  %v98 = vunpack.c.l.bf16 %v40
  %v99 = vunpack.c.h.bf16 %v40
  %v100 = vunpack.c.l.bf16 %v41
  %v101 = vunpack.c.h.bf16 %v41
  %v102 = vunpack.c.l.bf16 %v42
  %v103 = vunpack.c.h.bf16 %v42
  %v104 = vunpack.c.l.bf16 %v43
  %v105 = vunpack.c.h.bf16 %v43
  %v106 = vunpack.c.l.bf16 %v44
  %v107 = vunpack.c.h.bf16 %v44
  %v108 = vunpack.c.l.bf16 %v45
  %v109 = vunpack.c.h.bf16 %v45
  %v110 = vld [vmem:[%s1] sm:$0xff]
  %v112 = vperm.slane %v110, 0
  %v113 = vperm.slane %v110, 1
  %v114 = vperm.slane %v110, 2
  %v115 = vperm.slane %v110, 3
  %v116 = vperm.slane %v110, 4
  %v117 = vperm.slane %v110, 5
  %v118 = vperm.slane %v110, 6
  %v119 = vperm.slane %v110, 7
  %v128 = vmul.f32 %v46, %v112
  %v129 = vmul.f32 %v47, %v113
  %v130 = vmul.f32 %v48, %v114
  %v131 = vmul.f32 %v49, %v115
  %v132 = vmul.f32 %v50, %v116
  %v133 = vmul.f32 %v51, %v117
  %v134 = vmul.f32 %v52, %v118
  %v135 = vmul.f32 %v53, %v119
  %v136 = vmul.f32 %v54, %v112
  %v137 = vmul.f32 %v55, %v113
  %v138 = vmul.f32 %v56, %v114
  %v139 = vmul.f32 %v57, %v115
  %v140 = vmul.f32 %v58, %v116
  %v141 = vmul.f32 %v59, %v117
  %v142 = vmul.f32 %v60, %v118
  %v143 = vmul.f32 %v61, %v119
  %v144 = vmul.f32 %v62, %v112
  %v145 = vmul.f32 %v63, %v113
  %v146 = vmul.f32 %v64, %v114
  %v147 = vmul.f32 %v65, %v115
  %v148 = vmul.f32 %v66, %v116
  %v149 = vmul.f32 %v67, %v117
  %v150 = vmul.f32 %v68, %v118
  %v151 = vmul.f32 %v69, %v119
  %v152 = vmul.f32 %v70, %v112
  %v153 = vmul.f32 %v71, %v113
  %v154 = vmul.f32 %v72, %v114
  %v155 = vmul.f32 %v73, %v115
  %v156 = vmul.f32 %v74, %v116
  %v157 = vmul.f32 %v75, %v117
  %v158 = vmul.f32 %v76, %v118
  %v159 = vmul.f32 %v77, %v119
  %v160 = vmul.f32 %v78, %v112
  %v161 = vmul.f32 %v79, %v113
  %v162 = vmul.f32 %v80, %v114
  %v163 = vmul.f32 %v81, %v115
  %v164 = vmul.f32 %v82, %v116
  %v165 = vmul.f32 %v83, %v117
  %v166 = vmul.f32 %v84, %v118
  %v167 = vmul.f32 %v85, %v119
  %v168 = vmul.f32 %v86, %v112
  %v169 = vmul.f32 %v87, %v113
  %v170 = vmul.f32 %v88, %v114
  %v171 = vmul.f32 %v89, %v115
  %v172 = vmul.f32 %v90, %v116
  %v173 = vmul.f32 %v91, %v117
  %v174 = vmul.f32 %v92, %v118
  %v175 = vmul.f32 %v93, %v119
  %v176 = vmul.f32 %v94, %v112
  %v177 = vmul.f32 %v95, %v113
  %v178 = vmul.f32 %v96, %v114
  %v179 = vmul.f32 %v97, %v115
  %v180 = vmul.f32 %v98, %v116
  %v181 = vmul.f32 %v99, %v117
  %v182 = vmul.f32 %v100, %v118
  %v183 = vmul.f32 %v101, %v119
  %v184 = vmul.f32 %v102, %v112
  %v185 = vmul.f32 %v103, %v113
  %v186 = vmul.f32 %v104, %v114
  %v187 = vmul.f32 %v105, %v115
  %v188 = vmul.f32 %v106, %v116
  %v189 = vmul.f32 %v107, %v117
  %v190 = vmul.f32 %v108, %v118
  %v191 = vmul.f32 %v109, %v119
  %v192 = vld [vmem:[%s2] sm:$0xff]
  %v194 = vperm.slane %v192, 0
  %v195 = vperm.slane %v192, 1
  %v196 = vperm.slane %v192, 2
  %v197 = vperm.slane %v192, 3
  %v198 = vperm.slane %v192, 4
  %v199 = vperm.slane %v192, 5
  %v200 = vperm.slane %v192, 6
  %v201 = vperm.slane %v192, 7
  %v210 = vadd.f32 %v128, %v194
  %v211 = vadd.f32 %v129, %v195
  %v212 = vadd.f32 %v130, %v196
  %v213 = vadd.f32 %v131, %v197
  %v214 = vadd.f32 %v132, %v198
  %v215 = vadd.f32 %v133, %v199
  %v216 = vadd.f32 %v134, %v200
  %v217 = vadd.f32 %v135, %v201
  %v218 = vadd.f32 %v136, %v194
  %v219 = vadd.f32 %v137, %v195
  %v220 = vadd.f32 %v138, %v196
  %v221 = vadd.f32 %v139, %v197
  %v222 = vadd.f32 %v140, %v198
  %v223 = vadd.f32 %v141, %v199
  %v224 = vadd.f32 %v142, %v200
  %v225 = vadd.f32 %v143, %v201
  %v226 = vadd.f32 %v144, %v194
  %v227 = vadd.f32 %v145, %v195
  %v228 = vadd.f32 %v146, %v196
  %v229 = vadd.f32 %v147, %v197
  %v230 = vadd.f32 %v148, %v198
  %v231 = vadd.f32 %v149, %v199
  %v232 = vadd.f32 %v150, %v200
  %v233 = vadd.f32 %v151, %v201
  %v234 = vadd.f32 %v152, %v194
  %v235 = vadd.f32 %v153, %v195
  %v236 = vadd.f32 %v154, %v196
  %v237 = vadd.f32 %v155, %v197
  %v238 = vadd.f32 %v156, %v198
  %v239 = vadd.f32 %v157, %v199
  %v240 = vadd.f32 %v158, %v200
  %v241 = vadd.f32 %v159, %v201
  %v242 = vadd.f32 %v160, %v194
  %v243 = vadd.f32 %v161, %v195
  %v244 = vadd.f32 %v162, %v196
  %v245 = vadd.f32 %v163, %v197
  %v246 = vadd.f32 %v164, %v198
  %v247 = vadd.f32 %v165, %v199
  %v248 = vadd.f32 %v166, %v200
  %v249 = vadd.f32 %v167, %v201
  %v250 = vadd.f32 %v168, %v194
  %v251 = vadd.f32 %v169, %v195
  %v252 = vadd.f32 %v170, %v196
  %v253 = vadd.f32 %v171, %v197
  %v254 = vadd.f32 %v172, %v198
  %v255 = vadd.f32 %v173, %v199
  %v256 = vadd.f32 %v174, %v200
  %v257 = vadd.f32 %v175, %v201
  %v258 = vadd.f32 %v176, %v194
  %v259 = vadd.f32 %v177, %v195
  %v260 = vadd.f32 %v178, %v196
  %v261 = vadd.f32 %v179, %v197
  %v262 = vadd.f32 %v180, %v198
  %v263 = vadd.f32 %v181, %v199
  %v264 = vadd.f32 %v182, %v200
  %v265 = vadd.f32 %v183, %v201
  %v266 = vadd.f32 %v184, %v194
  %v267 = vadd.f32 %v185, %v195
  %v268 = vadd.f32 %v186, %v196
  %v269 = vadd.f32 %v187, %v197
  %v270 = vadd.f32 %v188, %v198
  %v271 = vadd.f32 %v189, %v199
  %v272 = vadd.f32 %v190, %v200
  %v273 = vadd.f32 %v191, %v201
  %v274 = vmax.f32 %v210, 0.0
  %v275 = vmax.f32 %v211, 0.0
  %v276 = vmax.f32 %v212, 0.0
  %v277 = vmax.f32 %v213, 0.0
  %v278 = vmax.f32 %v214, 0.0
  %v279 = vmax.f32 %v215, 0.0
  %v280 = vmax.f32 %v216, 0.0
  %v281 = vmax.f32 %v217, 0.0
  %v282 = vmax.f32 %v218, 0.0
  %v283 = vmax.f32 %v219, 0.0
  %v284 = vmax.f32 %v220, 0.0
  %v285 = vmax.f32 %v221, 0.0
  %v286 = vmax.f32 %v222, 0.0
  %v287 = vmax.f32 %v223, 0.0
  %v288 = vmax.f32 %v224, 0.0
  %v289 = vmax.f32 %v225, 0.0
  %v290 = vmax.f32 %v226, 0.0
  %v291 = vmax.f32 %v227, 0.0
  %v292 = vmax.f32 %v228, 0.0
  %v293 = vmax.f32 %v229, 0.0
  %v294 = vmax.f32 %v230, 0.0
  %v295 = vmax.f32 %v231, 0.0
  %v296 = vmax.f32 %v232, 0.0
  %v297 = vmax.f32 %v233, 0.0
  %v298 = vmax.f32 %v234, 0.0
  %v299 = vmax.f32 %v235, 0.0
  %v300 = vmax.f32 %v236, 0.0
  %v301 = vmax.f32 %v237, 0.0
  %v302 = vmax.f32 %v238, 0.0
  %v303 = vmax.f32 %v239, 0.0
  %v304 = vmax.f32 %v240, 0.0
  %v305 = vmax.f32 %v241, 0.0
  %v306 = vmax.f32 %v242, 0.0
  %v307 = vmax.f32 %v243, 0.0
  %v308 = vmax.f32 %v244, 0.0
  %v309 = vmax.f32 %v245, 0.0
  %v310 = vmax.f32 %v246, 0.0
  %v311 = vmax.f32 %v247, 0.0
  %v312 = vmax.f32 %v248, 0.0
  %v313 = vmax.f32 %v249, 0.0
  %v314 = vmax.f32 %v250, 0.0
  %v315 = vmax.f32 %v251, 0.0
  %v316 = vmax.f32 %v252, 0.0
  %v317 = vmax.f32 %v253, 0.0
  %v318 = vmax.f32 %v254, 0.0
  %v319 = vmax.f32 %v255, 0.0
  %v320 = vmax.f32 %v256, 0.0
  %v321 = vmax.f32 %v257, 0.0
  %v322 = vmax.f32 %v258, 0.0
  %v323 = vmax.f32 %v259, 0.0
  %v324 = vmax.f32 %v260, 0.0
  %v325 = vmax.f32 %v261, 0.0
  %v326 = vmax.f32 %v262, 0.0
  %v327 = vmax.f32 %v263, 0.0
  %v328 = vmax.f32 %v264, 0.0
  %v329 = vmax.f32 %v265, 0.0
  %v330 = vmax.f32 %v266, 0.0
  %v331 = vmax.f32 %v267, 0.0
  %v332 = vmax.f32 %v268, 0.0
  %v333 = vmax.f32 %v269, 0.0
  %v334 = vmax.f32 %v270, 0.0
  %v335 = vmax.f32 %v271, 0.0
  %v336 = vmax.f32 %v272, 0.0
  %v337 = vmax.f32 %v273, 0.0
  %338 = vst [vmem:[%s3] sm:$0xff] %v274
  %339 = vst [vmem:[%s3 + $0x8] sm:$0xff] %v275
  %340 = vst [vmem:[%s3 + $0x10] sm:$0xff] %v276
  %341 = vst [vmem:[%s3 + $0x18] sm:$0xff] %v277
  %342 = vst [vmem:[%s3 + $0x20] sm:$0xff] %v278
  %343 = vst [vmem:[%s3 + $0x28] sm:$0xff] %v279
  %344 = vst [vmem:[%s3 + $0x30] sm:$0xff] %v280
  %345 = vst [vmem:[%s3 + $0x38] sm:$0xff] %v281
  %346 = vst [vmem:[%s3 + $0x40] sm:$0xff] %v282
  %347 = vst [vmem:[%s3 + $0x48] sm:$0xff] %v283
  %348 = vst [vmem:[%s3 + $0x50] sm:$0xff] %v284
  %349 = vst [vmem:[%s3 + $0x58] sm:$0xff] %v285
  %350 = vst [vmem:[%s3 + $0x60] sm:$0xff] %v286
  %351 = vst [vmem:[%s3 + $0x68] sm:$0xff] %v287
  %352 = vst [vmem:[%s3 + $0x70] sm:$0xff] %v288
  %353 = vst [vmem:[%s3 + $0x78] sm:$0xff] %v289
  %354 = vst [vmem:[%s3 + $0x80] sm:$0xff] %v290
  %355 = vst [vmem:[%s3 + $0x88] sm:$0xff] %v291
  %356 = vst [vmem:[%s3 + $0x90] sm:$0xff] %v292
  %357 = vst [vmem:[%s3 + $0x98] sm:$0xff] %v293
  %358 = vst [vmem:[%s3 + $0xa0] sm:$0xff] %v294
  %359 = vst [vmem:[%s3 + $0xa8] sm:$0xff] %v295
  %360 = vst [vmem:[%s3 + $0xb0] sm:$0xff] %v296
  %361 = vst [vmem:[%s3 + $0xb8] sm:$0xff] %v297
  %362 = vst [vmem:[%s3 + $0xc0] sm:$0xff] %v298
  %363 = vst [vmem:[%s3 + $0xc8] sm:$0xff] %v299
  %364 = vst [vmem:[%s3 + $0xd0] sm:$0xff] %v300
  %365 = vst [vmem:[%s3 + $0xd8] sm:$0xff] %v301
  %366 = vst [vmem:[%s3 + $0xe0] sm:$0xff] %v302
  %367 = vst [vmem:[%s3 + $0xe8] sm:$0xff] %v303
  %368 = vst [vmem:[%s3 + $0xf0] sm:$0xff] %v304
  %369 = vst [vmem:[%s3 + $0xf8] sm:$0xff] %v305
  %370 = vst [vmem:[%s3 + $0x100] sm:$0xff] %v306
  %371 = vst [vmem:[%s3 + $0x108] sm:$0xff] %v307
  %372 = vst [vmem:[%s3 + $0x110] sm:$0xff] %v308
  %373 = vst [vmem:[%s3 + $0x118] sm:$0xff] %v309
  %374 = vst [vmem:[%s3 + $0x120] sm:$0xff] %v310
  %375 = vst [vmem:[%s3 + $0x128] sm:$0xff] %v311
  %376 = vst [vmem:[%s3 + $0x130] sm:$0xff] %v312
  %377 = vst [vmem:[%s3 + $0x138] sm:$0xff] %v313
  %378 = vst [vmem:[%s3 + $0x140] sm:$0xff] %v314
  %379 = vst [vmem:[%s3 + $0x148] sm:$0xff] %v315
  %380 = vst [vmem:[%s3 + $0x150] sm:$0xff] %v316
  %381 = vst [vmem:[%s3 + $0x158] sm:$0xff] %v317
  %382 = vst [vmem:[%s3 + $0x160] sm:$0xff] %v318
  %383 = vst [vmem:[%s3 + $0x168] sm:$0xff] %v319
  %384 = vst [vmem:[%s3 + $0x170] sm:$0xff] %v320
  %385 = vst [vmem:[%s3 + $0x178] sm:$0xff] %v321
  %386 = vst [vmem:[%s3 + $0x180] sm:$0xff] %v322
  %387 = vst [vmem:[%s3 + $0x188] sm:$0xff] %v323
  %388 = vst [vmem:[%s3 + $0x190] sm:$0xff] %v324
  %389 = vst [vmem:[%s3 + $0x198] sm:$0xff] %v325
  %390 = vst [vmem:[%s3 + $0x1a0] sm:$0xff] %v326
  %391 = vst [vmem:[%s3 + $0x1a8] sm:$0xff] %v327
  %392 = vst [vmem:[%s3 + $0x1b0] sm:$0xff] %v328
  %393 = vst [vmem:[%s3 + $0x1b8] sm:$0xff] %v329
  %394 = vst [vmem:[%s3 + $0x1c0] sm:$0xff] %v330
  %395 = vst [vmem:[%s3 + $0x1c8] sm:$0xff] %v331
  %396 = vst [vmem:[%s3 + $0x1d0] sm:$0xff] %v332
  %397 = vst [vmem:[%s3 + $0x1d8] sm:$0xff] %v333
  %398 = vst [vmem:[%s3 + $0x1e0] sm:$0xff] %v334
  %399 = vst [vmem:[%s3 + $0x1e8] sm:$0xff] %v335
  %400 = vst [vmem:[%s3 + $0x1f0] sm:$0xff] %v336
  %401 = vst [vmem:[%s3 + $0x1f8] sm:$0xff] %v337
  // Predicated region
  $region14: #{conv_bn_relu.3} parent=0 // pred_check
    _
  $region15: #{conv_bn_relu.3} parent=0 // pred_check_branch
    %403 = sbr.rel (0) target = $region17
  $region16: #{conv_bn_relu.3} parent=0 // pred_region
    _
  $region17: #{conv_bn_relu.3} parent=0 // pred_fallthru
    _
  // Predicated region
  $region18: #{conv_bn_relu.3} parent=0 // pred_check
    _
  $region19: #{conv_bn_relu.3} parent=0 // pred_check_branch
    %405 = sbr.rel (0) target = $region21
  $region20: #{conv_bn_relu.3} parent=0 // pred_region
    _
  $region21: #{conv_bn_relu.3} parent=0 // pred_fallthru
    _

// kernel: conv_bn_relu.2
$region0: #{conv_bn_relu.2}
  #allocation0 [shape = 'u32[]', space=smem, size = 0x4, offset = 0x4, fixed_abs, tag = 'smem constant byte address 0x4 - core index']
  #allocation1 [shape = 'u32[72,128]{1,0:T(1,128)}', space=vmem, size = 0x9000, scoped, tag = 'internal scratch']
  #allocation2 [shape = 'bf16[18,18,4]{2,1,0:T(8,128)(2,1)}', space=vmem, size = 0x1b000, scoped, tag = 'scratch operand']
  %s0 = inlined_call_operand.vmem [shape: f32[2,16,16,4], index: 0, kind: input, shape index: {}]
  %s1 = inlined_call_operand.vmem [shape: bf16[36,128], index: 1, kind: input, shape index: {}]
  %s2 = inlined_call_operand.vmem [shape: bf16[2,16,16,128], index: 2, kind: output, shape index: {0}]
  %s3 = inlined_call_operand.vmem [shape: f32[2,1,2,128], index: 3, kind: output, shape index: {1}]
  %4 = xla_tuple %s2, %s3
  %s5 = sld [smem:[#allocation0]]
  $region53: #{conv_bn_relu.2} parent=0
    _
  %s7 = ssub.s32 1, %s5
  %s8 = scalar_select 0, %s7, %s5
  loop: start=0, step=1, limit=4
  $region2: #{conv_bn_relu.2} parent=0 // loop_pre_header
    _
  $region3: #{conv_bn_relu.2} parent=0 // loop_header
    %s10 = sphi 0, %s14
    %p11 = scmp.ge.s32.totalorder %s10, 4
    %s17 = sphi 0, %s29
    %s18 = sphi 0, %s25
    %s19 = sphi 0, %s17
    %s20 = sphi 0, %s18
    %s21 = sphi 0, %s19
    %s22 = sphi 0, %s20
    %s32 = sphi 0, %s34
    %s35 = sphi 0, %s32
    %s36 = sphi 0, %s35
    %s52 = sphi 0, %s36
    %s56 = sphi 0, %s56
    %s58 = sphi 0, %s56
    %s59 = sphi 0, %s58
    %s73 = sphi 0, %s59
    %s81 = sphi 0, %s83
    %s84 = sphi 0, %s81
    %s85 = sphi 0, %s84
    %s101 = sphi 0, %s85
    %s109 = sphi 0, %s111
    %s112 = sphi 0, %s109
    %s113 = sphi 0, %s112
    %s129 = sphi 0, %s113
  $region4: #{conv_bn_relu.2} parent=0 // loop_header_branch
    %13 = sbr.rel (%p11) target = $region8
  $region5: #{conv_bn_relu.2} parent=0 // loop_body
    %s15 = ssub.s32 %s10, 1
    %s16 = ssub.s32 %s10, 2
    %s23 = sadd.s32 1, %s18
    %p24 = scmp.ge.s32.totalorder %s23, 1
    %s25 = scalar_select %p24, 0, %s23
    %s26 = sadd.s32 1, %s17
    %s27 = scalar_select %p24, %s26, %s17
    %p28 = scmp.ge.s32.totalorder %s27, 2
    %s29 = scalar_select %p28, 0, %s27
    %s30 = ssub.s32 %s17, %s29
    %p31 = scmp.eq.s32.totalorder %s30, 0
    %s33 = sadd.s32 %s32, 1
    %s34 = scalar_select %p31, %s32, %s33
    %p37 = pneg %p31
    %p38 = scmp.eq.s32.totalorder %s10, 1
    %p39 = por %p37, %p38
    %p40 = scmp.ne.s32.totalorder %s32, %s35
    %p41 = scmp.eq.s32.totalorder %s10, 0
    %p42 = por %p40, %p41
    %p43 = scmp.ne.s32.totalorder %s32, %s35
    %p44 = scmp.eq.s32.totalorder %s15, 1
    %p45 = por %p43, %p44
    %p46 = scmp.ne.s32.totalorder %s35, %s36
    %p47 = scmp.eq.s32.totalorder %s15, 0
    %p48 = por %p46, %p47
    %p49 = scmp.ne.s32.totalorder %s35, %s36
    %p50 = scmp.eq.s32.totalorder %s16, 1
    %p51 = por %p49, %p50
    %p53 = scmp.ne.s32.totalorder %s36, %s52
    %p54 = scmp.eq.s32.totalorder %s16, 0
    %p55 = por %p53, %p54
    %s57 = sadd.s32 %s56, 1
    %p60 = scmp.eq.s32.totalorder %s10, 1
    %p61 = scmp.ne.s32.totalorder %s56, %s58
    %p62 = scmp.eq.s32.totalorder %s10, 0
    %p63 = por %p61, %p62
    %p64 = scmp.ne.s32.totalorder %s56, %s58
    %p65 = scmp.eq.s32.totalorder %s15, 1
    %p66 = por %p64, %p65
    %p67 = scmp.ne.s32.totalorder %s58, %s59
    %p68 = scmp.eq.s32.totalorder %s15, 0
    %p69 = por %p67, %p68
    %p70 = scmp.ne.s32.totalorder %s58, %s59
    %p71 = scmp.eq.s32.totalorder %s16, 1
    %p72 = por %p70, %p71
    %p74 = scmp.ne.s32.totalorder %s59, %s73
    %p75 = scmp.eq.s32.totalorder %s16, 0
    %p76 = por %p74, %p75
    %s77 = ssub.s32 %s17, %s29
    %s78 = ssub.s32 %s18, %s25
    %s79 = sor.u32 %s77, %s78
    %p80 = scmp.eq.s32.totalorder %s79, 0
    %s82 = sadd.s32 %s81, 1
    %s83 = scalar_select %p80, %s81, %s82
    %p86 = pneg %p80
    %p87 = scmp.eq.s32.totalorder %s10, 1
    %p88 = por %p86, %p87
    %p89 = scmp.ne.s32.totalorder %s81, %s84
    %p90 = scmp.eq.s32.totalorder %s10, 0
    %p91 = por %p89, %p90
    %p92 = scmp.ne.s32.totalorder %s81, %s84
    %p93 = scmp.eq.s32.totalorder %s15, 1
    %p94 = por %p92, %p93
    %p95 = scmp.ne.s32.totalorder %s84, %s85
    %p96 = scmp.eq.s32.totalorder %s15, 0
    %p97 = por %p95, %p96
    %p98 = scmp.ne.s32.totalorder %s84, %s85
    %p99 = scmp.eq.s32.totalorder %s16, 1
    %p100 = por %p98, %p99
    %p102 = scmp.ne.s32.totalorder %s85, %s101
    %p103 = scmp.eq.s32.totalorder %s16, 0
    %p104 = por %p102, %p103
    %s105 = ssub.s32 %s17, %s29
    %s106 = ssub.s32 %s18, %s25
    %s107 = sor.u32 %s105, %s106
    %p108 = scmp.eq.s32.totalorder %s107, 0
    %s110 = sadd.s32 %s109, 1
    %s111 = scalar_select %p108, %s109, %s110
    %p114 = pneg %p108
    %p115 = scmp.eq.s32.totalorder %s10, 1
    %p116 = por %p114, %p115
    %p117 = scmp.ne.s32.totalorder %s109, %s112
    %p118 = scmp.eq.s32.totalorder %s10, 0
    %p119 = por %p117, %p118
    %p120 = scmp.ne.s32.totalorder %s109, %s112
    %p121 = scmp.eq.s32.totalorder %s15, 1
    %p122 = por %p120, %p121
    %p123 = scmp.ne.s32.totalorder %s112, %s113
    %p124 = scmp.eq.s32.totalorder %s15, 0
    %p125 = por %p123, %p124
    %p126 = scmp.ne.s32.totalorder %s112, %s113
    %p127 = scmp.eq.s32.totalorder %s16, 1
    %p128 = por %p126, %p127
    %p130 = scmp.ne.s32.totalorder %s113, %s129
    %p131 = scmp.eq.s32.totalorder %s16, 0
    %p132 = por %p130, %p131
    %p133 = scmp.le.s32.totalorder 1, %s10
    %p134 = scmp.lt.s32.totalorder %s10, 3
    %p135 = pnand %p133, %p134
    %p136 = pneg %p135
    // Predicated region
    $region9: #{conv_bn_relu.2} parent=5 // pred_check
      _
    $region10: #{conv_bn_relu.2} parent=5 // pred_check_branch
      %138 = sbr.rel (%p135) target = $region12
    $region11: #{conv_bn_relu.2} parent=5 // pred_region
      %s139 = ssub.s32 %s10, 1
      // Predicated region
      $region13: #{conv_bn_relu.2} parent=11 // pred_check
        %p140 = pneg %p69
      $region14: #{conv_bn_relu.2} parent=11 // pred_check_branch
        %142 = sbr.rel (%p140) target = $region16
      $region15: #{conv_bn_relu.2} parent=11 // pred_region
        _
      $region16: #{conv_bn_relu.2} parent=11 // pred_fallthru
        _
    $region12: #{conv_bn_relu.2} parent=5 // pred_fallthru
      _
    %p143 = scmp.lt.s32.totalorder %s10, 2
    // Predicated region
    $region17: #{conv_bn_relu.2} parent=5 // pred_check
      %p144 = pneg %p143
    $region18: #{conv_bn_relu.2} parent=5 // pred_check_branch
      %146 = sbr.rel (%p144) target = $region20
    $region19: #{conv_bn_relu.2} parent=5 // pred_region
      // Predicated region
      $region21: #{conv_bn_relu.2} parent=19 // pred_check
        %p147 = pneg %p42
      $region22: #{conv_bn_relu.2} parent=19 // pred_check_branch
        %149 = sbr.rel (%p147) target = $region24
      $region23: #{conv_bn_relu.2} parent=19 // pred_region
        %p150 = scmp.lt.s32.totalorder %s17, 1
        %s151 = scalar_select %p150, %s17, 1
        %s152 = smul.addr %s151, 32
        %s153 = smul.addr %s152, 8
        %s154 = scalar_lea.vmem %s0, %s153
      $region24: #{conv_bn_relu.2} parent=19 // pred_fallthru
        _
    $region20: #{conv_bn_relu.2} parent=5 // pred_fallthru
      _
    %p155 = scmp.le.s32.totalorder 1, %s10
    %p156 = scmp.lt.s32.totalorder %s10, 3
    %p157 = pnand %p155, %p156
    %p158 = pneg %p157
    // Predicated region
    $region25: #{conv_bn_relu.2} parent=5 // pred_check
      _
    $region26: #{conv_bn_relu.2} parent=5 // pred_check_branch
      %160 = sbr.rel (%p157) target = $region28
    $region27: #{conv_bn_relu.2} parent=5 // pred_region
      %s161 = ssub.s32 %s10, 1
      %p162 = scmp.lt.s32.totalorder %s19, 1
      %s163 = scalar_select %p162, %s19, 1
      %s164 = smul.addr %s163, 32
      %s165 = smul.addr %s164, 8
      %s166 = scalar_lea.vmem %s0, %s165
      %p167 = pneg %p48
      %p168 = pneg %p45
      %p169 = pneg %p69
      %p170 = pneg %p66
      %p171 = pneg %p97
      %p172 = pneg %p94
      %s173 = smul.u32 16, %s20
      %p174 = scmp.lt.s32.totalorder %s19, 1
      %s175 = scalar_select %p174, %s19, 1
      %p176 = scmp.lt.s32.totalorder %s173, 15
      %s177 = scalar_select %p176, %s173, 15
      %s178 = smul.addr %s177, 2
      %s179 = smul.addr %s175, 32
      %s180 = sadd.s32 %s178, %s179
      %s181 = smul.addr %s180, 4
      %s182 = scalar_lea.vmem %s2, %s181
      %p183 = pneg %p125
      %p184 = pneg %p122
      %p185 = scmp.lt.s32.totalorder %s19, 1
      %s186 = scalar_select %p185, %s19, 1
      %p187 = scmp.lt.s32.totalorder %s20, 0
      %s188 = scalar_select %p187, %s20, 0
      %s189 = sadd.s32 %s188, %s186
      %s190 = smul.addr %s189, 2
      %s191 = scalar_lea.vmem %s3, %s190
      %p192 = scmp.lt.s32.totalorder %s19, 1
      %s193 = scalar_select %p192, %s19, 1
      %s194 = smul.addr %s193, 32
      %s195 = smul.addr %s194, 8
      %s196 = scalar_lea.vmem %s0, %s195
      %s197 = smul.u32 16, %s20
      %p198 = scmp.lt.s32.totalorder %s19, 1
      %s199 = scalar_select %p198, %s19, 1
      %p200 = scmp.lt.s32.totalorder %s197, 15
      %s201 = scalar_select %p200, %s197, 15
      %s202 = smul.addr %s201, 2
      %s203 = smul.addr %s199, 32
      %s204 = sadd.s32 %s202, %s203
      %s205 = smul.addr %s204, 4
      %s206 = scalar_lea.vmem %s2, %s205
      %s207 = smul.u32 16, %s20
      %p208 = scmp.lt.s32.totalorder %s19, 1
      %s209 = scalar_select %p208, %s19, 1
      %p210 = scmp.lt.s32.totalorder %s20, 0
      %s211 = scalar_select %p210, %s20, 0
      %s212 = sadd.s32 %s211, %s209
      %s213 = smul.addr %s212, 2
      %s214 = scalar_lea.vmem %s3, %s213
      %p216 = scmp.eq.s32.totalorder %s20, 0
      // Predicated region
      $region29: #{conv_bn_relu.2} parent=27 // pred_check
        %p217 = pneg %p216
      $region30: #{conv_bn_relu.2} parent=27 // pred_check_branch
        %219 = sbr.rel (%p217) target = $region32
      $region31: #{conv_bn_relu.2} parent=27 // pred_region
        %vm220 = vcmask 27648
        %221 = vst.msk [vmem:[#allocation2] sm:$0xf] %vm220, 0
        %222 = vst.msk [vmem:[#allocation2 + $0x4] sm:$0xf] %vm220, 0
        %vm223 = vcmask 24576
        %224 = vst.msk [vmem:[#allocation2 + $0x8] sm:$0x1] %vm223, 0
        %225 = vst.msk [vmem:[#allocation2 + $0xc] sm:$0xf] %vm220, 0
        %226 = vst.msk [vmem:[#allocation2 + $0x10] sm:$0xf] %vm220, 0
        %227 = vst.msk [vmem:[#allocation2 + $0x14] sm:$0x1] %vm223, 0
        %228 = vst.msk [vmem:[#allocation2 + $0x18] sm:$0xf] %vm220, 0
        %229 = vst.msk [vmem:[#allocation2 + $0x1c] sm:$0xf] %vm220, 0
        %230 = vst.msk [vmem:[#allocation2 + $0x20] sm:$0x1] %vm223, 0
        %231 = vst.msk [vmem:[#allocation2 + $0x24] sm:$0xf] %vm220, 0
        %232 = vst.msk [vmem:[#allocation2 + $0x28] sm:$0xf] %vm220, 0
        %233 = vst.msk [vmem:[#allocation2 + $0x2c] sm:$0x1] %vm223, 0
        %234 = vst.msk [vmem:[#allocation2 + $0x30] sm:$0xf] %vm220, 0
        %235 = vst.msk [vmem:[#allocation2 + $0x34] sm:$0xf] %vm220, 0
        %236 = vst.msk [vmem:[#allocation2 + $0x38] sm:$0x1] %vm223, 0
        %237 = vst.msk [vmem:[#allocation2 + $0x3c] sm:$0xf] %vm220, 0
        %238 = vst.msk [vmem:[#allocation2 + $0x40] sm:$0xf] %vm220, 0
        %239 = vst.msk [vmem:[#allocation2 + $0x44] sm:$0x1] %vm223, 0
        %240 = vst.msk [vmem:[#allocation2 + $0x48] sm:$0xf] %vm220, 0
        %241 = vst.msk [vmem:[#allocation2 + $0x4c] sm:$0xf] %vm220, 0
        %242 = vst.msk [vmem:[#allocation2 + $0x50] sm:$0x1] %vm223, 0
        %243 = vst.msk [vmem:[#allocation2 + $0x54] sm:$0xf] %vm220, 0
        %244 = vst.msk [vmem:[#allocation2 + $0x58] sm:$0xf] %vm220, 0
        %245 = vst.msk [vmem:[#allocation2 + $0x5c] sm:$0x1] %vm223, 0
        %246 = vst.msk [vmem:[#allocation2 + $0x60] sm:$0xf] %vm220, 0
        %247 = vst.msk [vmem:[#allocation2 + $0x64] sm:$0xf] %vm220, 0
        %248 = vst.msk [vmem:[#allocation2 + $0x68] sm:$0x1] %vm223, 0
        %249 = vst.msk [vmem:[#allocation2 + $0x6c] sm:$0xf] %vm220, 0
        %250 = vst.msk [vmem:[#allocation2 + $0x70] sm:$0xf] %vm220, 0
        %251 = vst.msk [vmem:[#allocation2 + $0x74] sm:$0x1] %vm223, 0
        %252 = vst.msk [vmem:[#allocation2 + $0x78] sm:$0xf] %vm220, 0
        %253 = vst.msk [vmem:[#allocation2 + $0x7c] sm:$0xf] %vm220, 0
        %254 = vst.msk [vmem:[#allocation2 + $0x80] sm:$0x1] %vm223, 0
        %255 = vst.msk [vmem:[#allocation2 + $0x84] sm:$0xf] %vm220, 0
        %256 = vst.msk [vmem:[#allocation2 + $0x88] sm:$0xf] %vm220, 0
        %257 = vst.msk [vmem:[#allocation2 + $0x8c] sm:$0x1] %vm223, 0
        %258 = vst.msk [vmem:[#allocation2 + $0x90] sm:$0xf] %vm220, 0
        %259 = vst.msk [vmem:[#allocation2 + $0x94] sm:$0xf] %vm220, 0
        %260 = vst.msk [vmem:[#allocation2 + $0x98] sm:$0x1] %vm223, 0
        %261 = vst.msk [vmem:[#allocation2 + $0x9c] sm:$0xf] %vm220, 0
        %262 = vst.msk [vmem:[#allocation2 + $0xa0] sm:$0xf] %vm220, 0
        %263 = vst.msk [vmem:[#allocation2 + $0xa4] sm:$0x1] %vm223, 0
        %264 = vst.msk [vmem:[#allocation2 + $0xa8] sm:$0xf] %vm220, 0
        %265 = vst.msk [vmem:[#allocation2 + $0xac] sm:$0xf] %vm220, 0
        %266 = vst.msk [vmem:[#allocation2 + $0xb0] sm:$0x1] %vm223, 0
        %267 = vst.msk [vmem:[#allocation2 + $0xb4] sm:$0xf] %vm220, 0
        %268 = vst.msk [vmem:[#allocation2 + $0xb8] sm:$0xf] %vm220, 0
        %269 = vst.msk [vmem:[#allocation2 + $0xbc] sm:$0x1] %vm223, 0
        %270 = vst.msk [vmem:[#allocation2 + $0xc0] sm:$0xf] %vm220, 0
        %271 = vst.msk [vmem:[#allocation2 + $0xc4] sm:$0xf] %vm220, 0
        %272 = vst.msk [vmem:[#allocation2 + $0xc8] sm:$0x1] %vm223, 0
        %273 = vst.msk [vmem:[#allocation2 + $0xcc] sm:$0xf] %vm220, 0
        %274 = vst.msk [vmem:[#allocation2 + $0xd0] sm:$0xf] %vm220, 0
        %275 = vst.msk [vmem:[#allocation2 + $0xd4] sm:$0x1] %vm223, 0
        %v276 = vld [vmem:[%s196] sm:$0xff]
        %v277 = vld [vmem:[%s196 + $0x8] sm:$0xff]
        %v278 = vld [vmem:[%s196 + $0x10] sm:$0xff]
        %v279 = vld [vmem:[%s196 + $0x18] sm:$0xff]
        %v280 = vld [vmem:[%s196 + $0x20] sm:$0xff]
        %v281 = vld [vmem:[%s196 + $0x28] sm:$0xff]
        %v282 = vld [vmem:[%s196 + $0x30] sm:$0xff]
        %v283 = vld [vmem:[%s196 + $0x38] sm:$0xff]
        %v284 = vld [vmem:[%s196 + $0x40] sm:$0xff]
        %v285 = vld [vmem:[%s196 + $0x48] sm:$0xff]
        %v286 = vld [vmem:[%s196 + $0x50] sm:$0xff]
        %v287 = vld [vmem:[%s196 + $0x58] sm:$0xff]
        %v288 = vld [vmem:[%s196 + $0x60] sm:$0xff]
        %v289 = vld [vmem:[%s196 + $0x68] sm:$0xff]
        %v290 = vld [vmem:[%s196 + $0x70] sm:$0xff]
        %v291 = vld [vmem:[%s196 + $0x78] sm:$0xff]
        %v292 = vld [vmem:[%s196 + $0x80] sm:$0xff]
        %v293 = vld [vmem:[%s196 + $0x88] sm:$0xff]
        %v294 = vld [vmem:[%s196 + $0x90] sm:$0xff]
        %v295 = vld [vmem:[%s196 + $0x98] sm:$0xff]
        %v296 = vld [vmem:[%s196 + $0xa0] sm:$0xff]
        %v297 = vld [vmem:[%s196 + $0xa8] sm:$0xff]
        %v298 = vld [vmem:[%s196 + $0xb0] sm:$0xff]
        %v299 = vld [vmem:[%s196 + $0xb8] sm:$0xff]
        %v300 = vld [vmem:[%s196 + $0xc0] sm:$0xff]
        %v301 = vld [vmem:[%s196 + $0xc8] sm:$0xff]
        %v302 = vld [vmem:[%s196 + $0xd0] sm:$0xff]
        %v303 = vld [vmem:[%s196 + $0xd8] sm:$0xff]
        %v304 = vld [vmem:[%s196 + $0xe0] sm:$0xff]
        %v305 = vld [vmem:[%s196 + $0xe8] sm:$0xff]
        %v306 = vld [vmem:[%s196 + $0xf0] sm:$0xff]
        %v307 = vld [vmem:[%s196 + $0xf8] sm:$0xff]
        %v308 = vpack.c.bf16 %v276, %v276
        %v309 = vpack.c.bf16 %v277, %v277
        %v310 = vpack.c.bf16 %v278, %v278
        %v311 = vpack.c.bf16 %v279, %v279
        %v312 = vpack.c.bf16 %v280, %v280
        %v313 = vpack.c.bf16 %v281, %v281
        %v314 = vpack.c.bf16 %v282, %v282
        %v315 = vpack.c.bf16 %v283, %v283
        %v316 = vpack.c.bf16 %v284, %v284
        %v317 = vpack.c.bf16 %v285, %v285
        %v318 = vpack.c.bf16 %v286, %v286
        %v319 = vpack.c.bf16 %v287, %v287
        %v320 = vpack.c.bf16 %v288, %v288
        %v321 = vpack.c.bf16 %v289, %v289
        %v322 = vpack.c.bf16 %v290, %v290
        %v323 = vpack.c.bf16 %v291, %v291
        %v324 = vpack.c.bf16 %v292, %v292
        %v325 = vpack.c.bf16 %v293, %v293
        %v326 = vpack.c.bf16 %v294, %v294
        %v327 = vpack.c.bf16 %v295, %v295
        %v328 = vpack.c.bf16 %v296, %v296
        %v329 = vpack.c.bf16 %v297, %v297
        %v330 = vpack.c.bf16 %v298, %v298
        %v331 = vpack.c.bf16 %v299, %v299
        %v332 = vpack.c.bf16 %v300, %v300
        %v333 = vpack.c.bf16 %v301, %v301
        %v334 = vpack.c.bf16 %v302, %v302
        %v335 = vpack.c.bf16 %v303, %v303
        %v336 = vpack.c.bf16 %v304, %v304
        %v337 = vpack.c.bf16 %v305, %v305
        %v338 = vpack.c.bf16 %v306, %v306
        %v339 = vpack.c.bf16 %v307, %v307
        %vm340 = vsmask.f32 256
        %vm341 = vsmask.f32 4368
        %vm342 = vmor %vm340, %vm341
        %v344 = vshrl.u32 %v308, 16
        %v346 = vrot.slane %v344, 7
        %v347 = vshll.u32 %v308, 16
        %v349 = vor.u32 %v346, %v347
        %v350 = vrot.slane %v346, 4
        %v352 = vshrl.u32 %v309, 16
        %v354 = vrot.slane %v352, 7
        %v355 = vshll.u32 %v309, 16
        %v357 = vor.u32 %v354, %v355
        %v358 = vsel %vm342, %v350, %v357
        %v359 = vrot.slane %v354, 4
        %v361 = vshrl.u32 %v310, 16
        %v363 = vrot.slane %v361, 7
        %v364 = vshll.u32 %v310, 16
        %v366 = vor.u32 %v363, %v364
        %v367 = vrot.slane %v363, 4
        %v369 = vshrl.u32 %v311, 16
        %v371 = vrot.slane %v369, 7
        %v372 = vshll.u32 %v311, 16
        %v374 = vor.u32 %v371, %v372
        %v375 = vsel %vm342, %v367, %v374
        %v376 = vrot.slane %v371, 4
        %v378 = vshrl.u32 %v312, 16
        %v380 = vrot.slane %v378, 7
        %v381 = vshll.u32 %v312, 16
        %v383 = vor.u32 %v380, %v381
        %v384 = vrot.slane %v380, 4
        %v386 = vshrl.u32 %v313, 16
        %v388 = vrot.slane %v386, 7
        %v389 = vshll.u32 %v313, 16
        %v391 = vor.u32 %v388, %v389
        %v392 = vsel %vm342, %v384, %v391
        %v393 = vrot.slane %v388, 4
        %v395 = vshrl.u32 %v314, 16
        %v397 = vrot.slane %v395, 7
        %v398 = vshll.u32 %v314, 16
        %v400 = vor.u32 %v397, %v398
        %v401 = vrot.slane %v397, 4
        %v403 = vshrl.u32 %v315, 16
        %v405 = vrot.slane %v403, 7
        %v406 = vshll.u32 %v315, 16
        %v408 = vor.u32 %v405, %v406
        %v409 = vsel %vm342, %v401, %v408
        %v410 = vrot.slane %v405, 4
        %v412 = vshrl.u32 %v316, 16
        %v414 = vrot.slane %v412, 7
        %v415 = vshll.u32 %v316, 16
        %v417 = vor.u32 %v414, %v415
        %v418 = vrot.slane %v414, 4
        %v420 = vshrl.u32 %v317, 16
        %v422 = vrot.slane %v420, 7
        %v423 = vshll.u32 %v317, 16
        %v425 = vor.u32 %v422, %v423
        %v426 = vsel %vm342, %v418, %v425
        %v427 = vrot.slane %v422, 4
        %v429 = vshrl.u32 %v318, 16
        %v431 = vrot.slane %v429, 7
        %v432 = vshll.u32 %v318, 16
        %v434 = vor.u32 %v431, %v432
        %v435 = vrot.slane %v431, 4
        %v437 = vshrl.u32 %v319, 16
        %v439 = vrot.slane %v437, 7
        %v440 = vshll.u32 %v319, 16
        %v442 = vor.u32 %v439, %v440
        %v443 = vsel %vm342, %v435, %v442
        %v444 = vrot.slane %v439, 4
        %v446 = vshrl.u32 %v320, 16
        %v448 = vrot.slane %v446, 7
        %v449 = vshll.u32 %v320, 16
        %v451 = vor.u32 %v448, %v449
        %v452 = vrot.slane %v448, 4
        %v454 = vshrl.u32 %v321, 16
        %v456 = vrot.slane %v454, 7
        %v457 = vshll.u32 %v321, 16
        %v459 = vor.u32 %v456, %v457
        %v460 = vsel %vm342, %v452, %v459
        %v461 = vrot.slane %v456, 4
        %v463 = vshrl.u32 %v322, 16
        %v465 = vrot.slane %v463, 7
        %v466 = vshll.u32 %v322, 16
        %v468 = vor.u32 %v465, %v466
        %v469 = vrot.slane %v465, 4
        %v471 = vshrl.u32 %v323, 16
        %v473 = vrot.slane %v471, 7
        %v474 = vshll.u32 %v323, 16
        %v476 = vor.u32 %v473, %v474
        %v477 = vsel %vm342, %v469, %v476
        %v478 = vrot.slane %v473, 4
        %v480 = vshrl.u32 %v324, 16
        %v482 = vrot.slane %v480, 7
        %v483 = vshll.u32 %v324, 16
        %v485 = vor.u32 %v482, %v483
        %v486 = vrot.slane %v482, 4
        %v488 = vshrl.u32 %v325, 16
        %v490 = vrot.slane %v488, 7
        %v491 = vshll.u32 %v325, 16
        %v493 = vor.u32 %v490, %v491
        %v494 = vsel %vm342, %v486, %v493
        %v495 = vrot.slane %v490, 4
        %v497 = vshrl.u32 %v326, 16
        %v499 = vrot.slane %v497, 7
        %v500 = vshll.u32 %v326, 16
        %v502 = vor.u32 %v499, %v500
        %v503 = vrot.slane %v499, 4
        %v505 = vshrl.u32 %v327, 16
        %v507 = vrot.slane %v505, 7
        %v508 = vshll.u32 %v327, 16
        %v510 = vor.u32 %v507, %v508
        %v511 = vsel %vm342, %v503, %v510
        %v512 = vrot.slane %v507, 4
        %v514 = vshrl.u32 %v328, 16
        %v516 = vrot.slane %v514, 7
        %v517 = vshll.u32 %v328, 16
        %v519 = vor.u32 %v516, %v517
        %v520 = vrot.slane %v516, 4
        %v522 = vshrl.u32 %v329, 16
        %v524 = vrot.slane %v522, 7
        %v525 = vshll.u32 %v329, 16
        %v527 = vor.u32 %v524, %v525
        %v528 = vsel %vm342, %v520, %v527
        %v529 = vrot.slane %v524, 4
        %v531 = vshrl.u32 %v330, 16
        %v533 = vrot.slane %v531, 7
        %v534 = vshll.u32 %v330, 16
        %v536 = vor.u32 %v533, %v534
        %v537 = vrot.slane %v533, 4
        %v539 = vshrl.u32 %v331, 16
        %v541 = vrot.slane %v539, 7
        %v542 = vshll.u32 %v331, 16
        %v544 = vor.u32 %v541, %v542
        %v545 = vsel %vm342, %v537, %v544
        %v546 = vrot.slane %v541, 4
        %v548 = vshrl.u32 %v332, 16
        %v550 = vrot.slane %v548, 7
        %v551 = vshll.u32 %v332, 16
        %v553 = vor.u32 %v550, %v551
        %v554 = vrot.slane %v550, 4
        %v556 = vshrl.u32 %v333, 16
        %v558 = vrot.slane %v556, 7
        %v559 = vshll.u32 %v333, 16
        %v561 = vor.u32 %v558, %v559
        %v562 = vsel %vm342, %v554, %v561
        %v563 = vrot.slane %v558, 4
        %v565 = vshrl.u32 %v334, 16
        %v567 = vrot.slane %v565, 7
        %v568 = vshll.u32 %v334, 16
        %v570 = vor.u32 %v567, %v568
        %v571 = vrot.slane %v567, 4
        %v573 = vshrl.u32 %v335, 16
        %v575 = vrot.slane %v573, 7
        %v576 = vshll.u32 %v335, 16
        %v578 = vor.u32 %v575, %v576
        %v579 = vsel %vm342, %v571, %v578
        %v580 = vrot.slane %v575, 4
        %v582 = vshrl.u32 %v336, 16
        %v584 = vrot.slane %v582, 7
        %v585 = vshll.u32 %v336, 16
        %v587 = vor.u32 %v584, %v585
        %v588 = vrot.slane %v584, 4
        %v590 = vshrl.u32 %v337, 16
        %v592 = vrot.slane %v590, 7
        %v593 = vshll.u32 %v337, 16
        %v595 = vor.u32 %v592, %v593
        %v596 = vsel %vm342, %v588, %v595
        %v597 = vrot.slane %v592, 4
        %v599 = vshrl.u32 %v338, 16
        %v601 = vrot.slane %v599, 7
        %v602 = vshll.u32 %v338, 16
        %v604 = vor.u32 %v601, %v602
        %v605 = vrot.slane %v601, 4
        %v607 = vshrl.u32 %v339, 16
        %v609 = vrot.slane %v607, 7
        %v610 = vshll.u32 %v339, 16
        %v612 = vor.u32 %v609, %v610
        %v613 = vsel %vm342, %v605, %v612
        %v614 = vrot.slane %v609, 4
        %s663 = scalar_lea.vmem [#allocation2], 12
        %vm664 = vcmask 27648
        %vm665 = vsmask.f32 7938
        %vm666 = vmand %vm664, %vm665
        %v667 = vld [vmem:[%s663] sm:$0xf]
        %v668 = vsel %vm666, %v349, %v667
        %669 = vst [vmem:[%s663] sm:$0xf] %v668
        %670 = vst.msk [vmem:[%s663 + $0x4] sm:$0xf] %vm220, %v358
        %vm671 = vcmask 24576
        %vm672 = vmand %vm671, %vm340
        %v673 = vld [vmem:[%s663 + $0x8] sm:$0x1]
        %v674 = vsel %vm672, %v359, %v673
        %675 = vst [vmem:[%s663 + $0x8] sm:$0x1] %v674
        %v676 = vld [vmem:[%s663 + $0xc] sm:$0xf]
        %v677 = vsel %vm666, %v366, %v676
        %678 = vst [vmem:[%s663 + $0xc] sm:$0xf] %v677
        %679 = vst.msk [vmem:[%s663 + $0x10] sm:$0xf] %vm220, %v375
        %v680 = vld [vmem:[%s663 + $0x14] sm:$0x1]
        %v681 = vsel %vm672, %v376, %v680
        %682 = vst [vmem:[%s663 + $0x14] sm:$0x1] %v681
        %v683 = vld [vmem:[%s663 + $0x18] sm:$0xf]
        %v684 = vsel %vm666, %v383, %v683
        %685 = vst [vmem:[%s663 + $0x18] sm:$0xf] %v684
        %686 = vst.msk [vmem:[%s663 + $0x1c] sm:$0xf] %vm220, %v392
        %v687 = vld [vmem:[%s663 + $0x20] sm:$0x1]
        %v688 = vsel %vm672, %v393, %v687
        %689 = vst [vmem:[%s663 + $0x20] sm:$0x1] %v688
        %v690 = vld [vmem:[%s663 + $0x24] sm:$0xf]
        %v691 = vsel %vm666, %v400, %v690
        %692 = vst [vmem:[%s663 + $0x24] sm:$0xf] %v691
        %693 = vst.msk [vmem:[%s663 + $0x28] sm:$0xf] %vm220, %v409
        %v694 = vld [vmem:[%s663 + $0x2c] sm:$0x1]
        %v695 = vsel %vm672, %v410, %v694
        %696 = vst [vmem:[%s663 + $0x2c] sm:$0x1] %v695
        %v697 = vld [vmem:[%s663 + $0x30] sm:$0xf]
        %v698 = vsel %vm666, %v417, %v697
        %699 = vst [vmem:[%s663 + $0x30] sm:$0xf] %v698
        %700 = vst.msk [vmem:[%s663 + $0x34] sm:$0xf] %vm220, %v426
        %v701 = vld [vmem:[%s663 + $0x38] sm:$0x1]
        %v702 = vsel %vm672, %v427, %v701
        %703 = vst [vmem:[%s663 + $0x38] sm:$0x1] %v702
        %v704 = vld [vmem:[%s663 + $0x3c] sm:$0xf]
        %v705 = vsel %vm666, %v434, %v704
        %706 = vst [vmem:[%s663 + $0x3c] sm:$0xf] %v705
        %707 = vst.msk [vmem:[%s663 + $0x40] sm:$0xf] %vm220, %v443
        %v708 = vld [vmem:[%s663 + $0x44] sm:$0x1]
        %v709 = vsel %vm672, %v444, %v708
        %710 = vst [vmem:[%s663 + $0x44] sm:$0x1] %v709
        %v711 = vld [vmem:[%s663 + $0x48] sm:$0xf]
        %v712 = vsel %vm666, %v451, %v711
        %713 = vst [vmem:[%s663 + $0x48] sm:$0xf] %v712
        %714 = vst.msk [vmem:[%s663 + $0x4c] sm:$0xf] %vm220, %v460
        %v715 = vld [vmem:[%s663 + $0x50] sm:$0x1]
        %v716 = vsel %vm672, %v461, %v715
        %717 = vst [vmem:[%s663 + $0x50] sm:$0x1] %v716
        %v718 = vld [vmem:[%s663 + $0x54] sm:$0xf]
        %v719 = vsel %vm666, %v468, %v718
        %720 = vst [vmem:[%s663 + $0x54] sm:$0xf] %v719
        %721 = vst.msk [vmem:[%s663 + $0x58] sm:$0xf] %vm220, %v477
        %v722 = vld [vmem:[%s663 + $0x5c] sm:$0x1]
        %v723 = vsel %vm672, %v478, %v722
        %724 = vst [vmem:[%s663 + $0x5c] sm:$0x1] %v723
        %v725 = vld [vmem:[%s663 + $0x60] sm:$0xf]
        %v726 = vsel %vm666, %v485, %v725
        %727 = vst [vmem:[%s663 + $0x60] sm:$0xf] %v726
        %728 = vst.msk [vmem:[%s663 + $0x64] sm:$0xf] %vm220, %v494
        %v729 = vld [vmem:[%s663 + $0x68] sm:$0x1]
        %v730 = vsel %vm672, %v495, %v729
        %731 = vst [vmem:[%s663 + $0x68] sm:$0x1] %v730
        %v732 = vld [vmem:[%s663 + $0x6c] sm:$0xf]
        %v733 = vsel %vm666, %v502, %v732
        %734 = vst [vmem:[%s663 + $0x6c] sm:$0xf] %v733
        %735 = vst.msk [vmem:[%s663 + $0x70] sm:$0xf] %vm220, %v511
        %v736 = vld [vmem:[%s663 + $0x74] sm:$0x1]
        %v737 = vsel %vm672, %v512, %v736
        %738 = vst [vmem:[%s663 + $0x74] sm:$0x1] %v737
        %v739 = vld [vmem:[%s663 + $0x78] sm:$0xf]
        %v740 = vsel %vm666, %v519, %v739
        %741 = vst [vmem:[%s663 + $0x78] sm:$0xf] %v740
        %742 = vst.msk [vmem:[%s663 + $0x7c] sm:$0xf] %vm220, %v528
        %v743 = vld [vmem:[%s663 + $0x80] sm:$0x1]
        %v744 = vsel %vm672, %v529, %v743
        %745 = vst [vmem:[%s663 + $0x80] sm:$0x1] %v744
        %v746 = vld [vmem:[%s663 + $0x84] sm:$0xf]
        %v747 = vsel %vm666, %v536, %v746
        %748 = vst [vmem:[%s663 + $0x84] sm:$0xf] %v747
        %749 = vst.msk [vmem:[%s663 + $0x88] sm:$0xf] %vm220, %v545
        %v750 = vld [vmem:[%s663 + $0x8c] sm:$0x1]
        %v751 = vsel %vm672, %v546, %v750
        %752 = vst [vmem:[%s663 + $0x8c] sm:$0x1] %v751
        %v753 = vld [vmem:[%s663 + $0x90] sm:$0xf]
        %v754 = vsel %vm666, %v553, %v753
        %755 = vst [vmem:[%s663 + $0x90] sm:$0xf] %v754
        %756 = vst.msk [vmem:[%s663 + $0x94] sm:$0xf] %vm220, %v562
        %v757 = vld [vmem:[%s663 + $0x98] sm:$0x1]
        %v758 = vsel %vm672, %v563, %v757
        %759 = vst [vmem:[%s663 + $0x98] sm:$0x1] %v758
        %v760 = vld [vmem:[%s663 + $0x9c] sm:$0xf]
        %v761 = vsel %vm666, %v570, %v760
        %762 = vst [vmem:[%s663 + $0x9c] sm:$0xf] %v761
        %763 = vst.msk [vmem:[%s663 + $0xa0] sm:$0xf] %vm220, %v579
        %v764 = vld [vmem:[%s663 + $0xa4] sm:$0x1]
        %v765 = vsel %vm672, %v580, %v764
        %766 = vst [vmem:[%s663 + $0xa4] sm:$0x1] %v765
        %v767 = vld [vmem:[%s663 + $0xa8] sm:$0xf]
        %v768 = vsel %vm666, %v587, %v767
        %769 = vst [vmem:[%s663 + $0xa8] sm:$0xf] %v768
        %770 = vst.msk [vmem:[%s663 + $0xac] sm:$0xf] %vm220, %v596
        %v771 = vld [vmem:[%s663 + $0xb0] sm:$0x1]
        %v772 = vsel %vm672, %v597, %v771
        %773 = vst [vmem:[%s663 + $0xb0] sm:$0x1] %v772
        %v774 = vld [vmem:[%s663 + $0xb4] sm:$0xf]
        %v775 = vsel %vm666, %v604, %v774
        %776 = vst [vmem:[%s663 + $0xb4] sm:$0xf] %v775
        %777 = vst.msk [vmem:[%s663 + $0xb8] sm:$0xf] %vm220, %v613
        %v778 = vld [vmem:[%s663 + $0xbc] sm:$0x1]
        %v779 = vsel %vm672, %v614, %v778
        %780 = vst [vmem:[%s663 + $0xbc] sm:$0x1] %v779
      $region32: #{conv_bn_relu.2} parent=27 // pred_fallthru
        _
      %s781 = smul.u32 %s20, 16
      %s782 = smul.u32 %s781, 3
      %s783 = smul.addr %s782, 4
      %s784 = scalar_lea.vmem [#allocation2], %s783
      %v785 = vld [vmem:[%s784] sm:$0xf]
      %v786 = vld [vmem:[%s784 + $0x4] sm:$0xf]
      %v787 = vld [vmem:[%s784 + $0x8] sm:$0x1]
      %v788 = vld [vmem:[%s784 + $0xc] sm:$0xf]
      %v789 = vld [vmem:[%s784 + $0x10] sm:$0xf]
      %v790 = vld [vmem:[%s784 + $0x14] sm:$0x1]
      %v791 = vld [vmem:[%s784 + $0x18] sm:$0xf]
      %v792 = vld [vmem:[%s784 + $0x1c] sm:$0xf]
      %v793 = vld [vmem:[%s784 + $0x20] sm:$0x1]
      %v794 = vld [vmem:[%s784 + $0x24] sm:$0xf]
      %v795 = vld [vmem:[%s784 + $0x28] sm:$0xf]
      %v796 = vld [vmem:[%s784 + $0x2c] sm:$0x1]
      %v797 = vld [vmem:[%s784 + $0x30] sm:$0xf]
      %v798 = vld [vmem:[%s784 + $0x34] sm:$0xf]
      %v799 = vld [vmem:[%s784 + $0x38] sm:$0x1]
      %v800 = vld [vmem:[%s784 + $0x3c] sm:$0xf]
      %v801 = vld [vmem:[%s784 + $0x40] sm:$0xf]
      %v802 = vld [vmem:[%s784 + $0x44] sm:$0x1]
      %v803 = vld [vmem:[%s784 + $0x48] sm:$0xf]
      %v804 = vld [vmem:[%s784 + $0x4c] sm:$0xf]
      %v805 = vld [vmem:[%s784 + $0x50] sm:$0x1]
      %v806 = vld [vmem:[%s784 + $0x54] sm:$0xf]
      %v807 = vld [vmem:[%s784 + $0x58] sm:$0xf]
      %v808 = vld [vmem:[%s784 + $0x5c] sm:$0x1]
      %v809 = vld [vmem:[%s784 + $0x60] sm:$0xf]
      %v810 = vld [vmem:[%s784 + $0x64] sm:$0xf]
      %v811 = vld [vmem:[%s784 + $0x68] sm:$0x1]
      %v812 = vld [vmem:[%s784 + $0x6c] sm:$0xf]
      %v813 = vld [vmem:[%s784 + $0x70] sm:$0xf]
      %v814 = vld [vmem:[%s784 + $0x74] sm:$0x1]
      %v815 = vld [vmem:[%s784 + $0x78] sm:$0xf]
      %v816 = vld [vmem:[%s784 + $0x7c] sm:$0xf]
      %v817 = vld [vmem:[%s784 + $0x80] sm:$0x1]
      %v818 = vld [vmem:[%s784 + $0x84] sm:$0xf]
      %v819 = vld [vmem:[%s784 + $0x88] sm:$0xf]
      %v820 = vld [vmem:[%s784 + $0x8c] sm:$0x1]
      %v821 = vld [vmem:[%s784 + $0x90] sm:$0xf]
      %v822 = vld [vmem:[%s784 + $0x94] sm:$0xf]
      %v823 = vld [vmem:[%s784 + $0x98] sm:$0x1]
      %v824 = vld [vmem:[%s784 + $0x9c] sm:$0xf]
      %v825 = vld [vmem:[%s784 + $0xa0] sm:$0xf]
      %v826 = vld [vmem:[%s784 + $0xa4] sm:$0x1]
      %v827 = vld [vmem:[%s784 + $0xa8] sm:$0xf]
      %v828 = vld [vmem:[%s784 + $0xac] sm:$0xf]
      %v829 = vld [vmem:[%s784 + $0xb0] sm:$0x1]
      %v830 = vld [vmem:[%s784 + $0xb4] sm:$0xf]
      %v831 = vld [vmem:[%s784 + $0xb8] sm:$0xf]
      %v832 = vld [vmem:[%s784 + $0xbc] sm:$0x1]
      %s833 = sadd.s32 %s781, 1
      %s834 = smul.u32 %s833, 3
      %s835 = smul.addr %s834, 4
      %s836 = scalar_lea.vmem [#allocation2], %s835
      %v837 = vld [vmem:[%s836] sm:$0xf]
      %v838 = vld [vmem:[%s836 + $0x4] sm:$0xf]
      %v839 = vld [vmem:[%s836 + $0x8] sm:$0x1]
      %v840 = vld [vmem:[%s836 + $0xc] sm:$0xf]
      %v841 = vld [vmem:[%s836 + $0x10] sm:$0xf]
      %v842 = vld [vmem:[%s836 + $0x14] sm:$0x1]
      %v843 = vld [vmem:[%s836 + $0x18] sm:$0xf]
      %v844 = vld [vmem:[%s836 + $0x1c] sm:$0xf]
      %v845 = vld [vmem:[%s836 + $0x20] sm:$0x1]
      %v846 = vld [vmem:[%s836 + $0x24] sm:$0xf]
      %v847 = vld [vmem:[%s836 + $0x28] sm:$0xf]
      %v848 = vld [vmem:[%s836 + $0x2c] sm:$0x1]
      %v849 = vld [vmem:[%s836 + $0x30] sm:$0xf]
      %v850 = vld [vmem:[%s836 + $0x34] sm:$0xf]
      %v851 = vld [vmem:[%s836 + $0x38] sm:$0x1]
      %v852 = vld [vmem:[%s836 + $0x3c] sm:$0xf]
      %v853 = vld [vmem:[%s836 + $0x40] sm:$0xf]
      %v854 = vld [vmem:[%s836 + $0x44] sm:$0x1]
      %v855 = vld [vmem:[%s836 + $0x48] sm:$0xf]
      %v856 = vld [vmem:[%s836 + $0x4c] sm:$0xf]
      %v857 = vld [vmem:[%s836 + $0x50] sm:$0x1]
      %v858 = vld [vmem:[%s836 + $0x54] sm:$0xf]
      %v859 = vld [vmem:[%s836 + $0x58] sm:$0xf]
      %v860 = vld [vmem:[%s836 + $0x5c] sm:$0x1]
      %v861 = vld [vmem:[%s836 + $0x60] sm:$0xf]
      %v862 = vld [vmem:[%s836 + $0x64] sm:$0xf]
      %v863 = vld [vmem:[%s836 + $0x68] sm:$0x1]
      %v864 = vld [vmem:[%s836 + $0x6c] sm:$0xf]
      %v865 = vld [vmem:[%s836 + $0x70] sm:$0xf]
      %v866 = vld [vmem:[%s836 + $0x74] sm:$0x1]
      %v867 = vld [vmem:[%s836 + $0x78] sm:$0xf]
      %v868 = vld [vmem:[%s836 + $0x7c] sm:$0xf]
      %v869 = vld [vmem:[%s836 + $0x80] sm:$0x1]
      %v870 = vld [vmem:[%s836 + $0x84] sm:$0xf]
      %v871 = vld [vmem:[%s836 + $0x88] sm:$0xf]
      %v872 = vld [vmem:[%s836 + $0x8c] sm:$0x1]
      %v873 = vld [vmem:[%s836 + $0x90] sm:$0xf]
      %v874 = vld [vmem:[%s836 + $0x94] sm:$0xf]
      %v875 = vld [vmem:[%s836 + $0x98] sm:$0x1]
      %v876 = vld [vmem:[%s836 + $0x9c] sm:$0xf]
      %v877 = vld [vmem:[%s836 + $0xa0] sm:$0xf]
      %v878 = vld [vmem:[%s836 + $0xa4] sm:$0x1]
      %v879 = vld [vmem:[%s836 + $0xa8] sm:$0xf]
      %v880 = vld [vmem:[%s836 + $0xac] sm:$0xf]
      %v881 = vld [vmem:[%s836 + $0xb0] sm:$0x1]
      %v882 = vld [vmem:[%s836 + $0xb4] sm:$0xf]
      %v883 = vld [vmem:[%s836 + $0xb8] sm:$0xf]
      %v884 = vld [vmem:[%s836 + $0xbc] sm:$0x1]
      %s885 = sadd.s32 %s781, 2
      %s886 = smul.u32 %s885, 3
      %s887 = smul.addr %s886, 4
      %s888 = scalar_lea.vmem [#allocation2], %s887
      %v889 = vld [vmem:[%s888] sm:$0xf]
      %v890 = vld [vmem:[%s888 + $0x4] sm:$0xf]
      %v891 = vld [vmem:[%s888 + $0x8] sm:$0x1]
      %v892 = vld [vmem:[%s888 + $0xc] sm:$0xf]
      %v893 = vld [vmem:[%s888 + $0x10] sm:$0xf]
      %v894 = vld [vmem:[%s888 + $0x14] sm:$0x1]
      %v895 = vld [vmem:[%s888 + $0x18] sm:$0xf]
      %v896 = vld [vmem:[%s888 + $0x1c] sm:$0xf]
      %v897 = vld [vmem:[%s888 + $0x20] sm:$0x1]
      %v898 = vld [vmem:[%s888 + $0x24] sm:$0xf]
      %v899 = vld [vmem:[%s888 + $0x28] sm:$0xf]
      %v900 = vld [vmem:[%s888 + $0x2c] sm:$0x1]
      %v901 = vld [vmem:[%s888 + $0x30] sm:$0xf]
      %v902 = vld [vmem:[%s888 + $0x34] sm:$0xf]
      %v903 = vld [vmem:[%s888 + $0x38] sm:$0x1]
      %v904 = vld [vmem:[%s888 + $0x3c] sm:$0xf]
      %v905 = vld [vmem:[%s888 + $0x40] sm:$0xf]
      %v906 = vld [vmem:[%s888 + $0x44] sm:$0x1]
      %v907 = vld [vmem:[%s888 + $0x48] sm:$0xf]
      %v908 = vld [vmem:[%s888 + $0x4c] sm:$0xf]
      %v909 = vld [vmem:[%s888 + $0x50] sm:$0x1]
      %v910 = vld [vmem:[%s888 + $0x54] sm:$0xf]
      %v911 = vld [vmem:[%s888 + $0x58] sm:$0xf]
      %v912 = vld [vmem:[%s888 + $0x5c] sm:$0x1]
      %v913 = vld [vmem:[%s888 + $0x60] sm:$0xf]
      %v914 = vld [vmem:[%s888 + $0x64] sm:$0xf]
      %v915 = vld [vmem:[%s888 + $0x68] sm:$0x1]
      %v916 = vld [vmem:[%s888 + $0x6c] sm:$0xf]
      %v917 = vld [vmem:[%s888 + $0x70] sm:$0xf]
      %v918 = vld [vmem:[%s888 + $0x74] sm:$0x1]
      %v919 = vld [vmem:[%s888 + $0x78] sm:$0xf]
      %v920 = vld [vmem:[%s888 + $0x7c] sm:$0xf]
      %v921 = vld [vmem:[%s888 + $0x80] sm:$0x1]
      %v922 = vld [vmem:[%s888 + $0x84] sm:$0xf]
      %v923 = vld [vmem:[%s888 + $0x88] sm:$0xf]
      %v924 = vld [vmem:[%s888 + $0x8c] sm:$0x1]
      %v925 = vld [vmem:[%s888 + $0x90] sm:$0xf]
      %v926 = vld [vmem:[%s888 + $0x94] sm:$0xf]
      %v927 = vld [vmem:[%s888 + $0x98] sm:$0x1]
      %v928 = vld [vmem:[%s888 + $0x9c] sm:$0xf]
      %v929 = vld [vmem:[%s888 + $0xa0] sm:$0xf]
      %v930 = vld [vmem:[%s888 + $0xa4] sm:$0x1]
      %v931 = vld [vmem:[%s888 + $0xa8] sm:$0xf]
      %v932 = vld [vmem:[%s888 + $0xac] sm:$0xf]
      %v933 = vld [vmem:[%s888 + $0xb0] sm:$0x1]
      %v934 = vld [vmem:[%s888 + $0xb4] sm:$0xf]
      %v935 = vld [vmem:[%s888 + $0xb8] sm:$0xf]
      %v936 = vld [vmem:[%s888 + $0xbc] sm:$0x1]
      %v969 = vunpack.c.l.b16 %v785
      %v970 = vunpack.c.l.b16 %v786
      %v971 = vunpack.c.l.b16 %v788
      %v972 = vunpack.c.l.b16 %v789
      %v973 = vunpack.c.l.b16 %v791
      %v974 = vunpack.c.l.b16 %v792
      %v975 = vunpack.c.l.b16 %v794
      %v976 = vunpack.c.l.b16 %v795
      %v977 = vunpack.c.l.b16 %v797
      %v978 = vunpack.c.l.b16 %v798
      %v979 = vunpack.c.l.b16 %v800
      %v980 = vunpack.c.l.b16 %v801
      %v981 = vunpack.c.l.b16 %v803
      %v982 = vunpack.c.l.b16 %v804
      %v983 = vunpack.c.l.b16 %v806
      %v984 = vunpack.c.l.b16 %v807
      %v985 = vunpack.c.l.b16 %v809
      %v986 = vunpack.c.l.b16 %v810
      %v987 = vunpack.c.l.b16 %v812
      %v988 = vunpack.c.l.b16 %v813
      %v989 = vunpack.c.l.b16 %v815
      %v990 = vunpack.c.l.b16 %v816
      %v991 = vunpack.c.l.b16 %v818
      %v992 = vunpack.c.l.b16 %v819
      %v993 = vunpack.c.l.b16 %v821
      %v994 = vunpack.c.l.b16 %v822
      %v995 = vunpack.c.l.b16 %v824
      %v996 = vunpack.c.l.b16 %v825
      %v997 = vunpack.c.l.b16 %v827
      %v998 = vunpack.c.l.b16 %v828
      %v999 = vunpack.c.l.b16 %v830
      %v1000 = vunpack.c.l.b16 %v831
      %v1001 = vpack.c.b16 %v970, %v969
      %v1002 = vpack.c.b16 %v972, %v971
      %v1003 = vpack.c.b16 %v974, %v973
      %v1004 = vpack.c.b16 %v976, %v975
      %v1005 = vpack.c.b16 %v978, %v977
      %v1006 = vpack.c.b16 %v980, %v979
      %v1007 = vpack.c.b16 %v982, %v981
      %v1008 = vpack.c.b16 %v984, %v983
      %v1009 = vpack.c.b16 %v986, %v985
      %v1010 = vpack.c.b16 %v988, %v987
      %v1011 = vpack.c.b16 %v990, %v989
      %v1012 = vpack.c.b16 %v992, %v991
      %v1013 = vpack.c.b16 %v994, %v993
      %v1014 = vpack.c.b16 %v996, %v995
      %v1015 = vpack.c.b16 %v998, %v997
      %v1016 = vpack.c.b16 %v1000, %v999
      %v1033 = vunpack.c.l.b16 %v787
      %v1034 = vunpack.c.l.b16 %v790
      %v1035 = vunpack.c.l.b16 %v793
      %v1036 = vunpack.c.l.b16 %v796
      %v1037 = vunpack.c.l.b16 %v799
      %v1038 = vunpack.c.l.b16 %v802
      %v1039 = vunpack.c.l.b16 %v805
      %v1040 = vunpack.c.l.b16 %v808
      %v1041 = vunpack.c.l.b16 %v811
      %v1042 = vunpack.c.l.b16 %v814
      %v1043 = vunpack.c.l.b16 %v817
      %v1044 = vunpack.c.l.b16 %v820
      %v1045 = vunpack.c.l.b16 %v823
      %v1046 = vunpack.c.l.b16 %v826
      %v1047 = vunpack.c.l.b16 %v829
      %v1048 = vunpack.c.l.b16 %v832
      %v1049 = vpack.c.b16 %v1033, %v1033
      %v1050 = vpack.c.b16 %v1034, %v1034
      %v1051 = vpack.c.b16 %v1035, %v1035
      %v1052 = vpack.c.b16 %v1036, %v1036
      %v1053 = vpack.c.b16 %v1037, %v1037
      %v1054 = vpack.c.b16 %v1038, %v1038
      %v1055 = vpack.c.b16 %v1039, %v1039
      %v1056 = vpack.c.b16 %v1040, %v1040
      %v1057 = vpack.c.b16 %v1041, %v1041
      %v1058 = vpack.c.b16 %v1042, %v1042
      %v1059 = vpack.c.b16 %v1043, %v1043
      %v1060 = vpack.c.b16 %v1044, %v1044
      %v1061 = vpack.c.b16 %v1045, %v1045
      %v1062 = vpack.c.b16 %v1046, %v1046
      %v1063 = vpack.c.b16 %v1047, %v1047
      %v1064 = vpack.c.b16 %v1048, %v1048
      %vm1065 = vsmask.f32 7424
      %v1067 = vshrl.u32 %v1001, 16
      %v1069 = vshll.u32 %v1001, 16
      %v1071 = vrot.slane %v1069, 1
      %v1072 = vor.u32 %v1067, %v1071
      %v1074 = vshll.u32 %v1049, 16
      %v1076 = vrot.slane %v1074, 1
      %v1077 = vsel %vm1065, %v1072, %v1076
      %v1079 = vshrl.u32 %v1002, 16
      %v1081 = vshll.u32 %v1002, 16
      %v1083 = vrot.slane %v1081, 1
      %v1084 = vor.u32 %v1079, %v1083
      %v1086 = vshll.u32 %v1050, 16
      %v1088 = vrot.slane %v1086, 1
      %v1089 = vsel %vm1065, %v1084, %v1088
      %v1091 = vshrl.u32 %v1003, 16
      %v1093 = vshll.u32 %v1003, 16
      %v1095 = vrot.slane %v1093, 1
      %v1096 = vor.u32 %v1091, %v1095
      %v1098 = vshll.u32 %v1051, 16
      %v1100 = vrot.slane %v1098, 1
      %v1101 = vsel %vm1065, %v1096, %v1100
      %v1103 = vshrl.u32 %v1004, 16
      %v1105 = vshll.u32 %v1004, 16
      %v1107 = vrot.slane %v1105, 1
      %v1108 = vor.u32 %v1103, %v1107
      %v1110 = vshll.u32 %v1052, 16
      %v1112 = vrot.slane %v1110, 1
      %v1113 = vsel %vm1065, %v1108, %v1112
      %v1115 = vshrl.u32 %v1005, 16
      %v1117 = vshll.u32 %v1005, 16
      %v1119 = vrot.slane %v1117, 1
      %v1120 = vor.u32 %v1115, %v1119
      %v1122 = vshll.u32 %v1053, 16
      %v1124 = vrot.slane %v1122, 1
      %v1125 = vsel %vm1065, %v1120, %v1124
      %v1127 = vshrl.u32 %v1006, 16
      %v1129 = vshll.u32 %v1006, 16
      %v1131 = vrot.slane %v1129, 1
      %v1132 = vor.u32 %v1127, %v1131
      %v1134 = vshll.u32 %v1054, 16
      %v1136 = vrot.slane %v1134, 1
      %v1137 = vsel %vm1065, %v1132, %v1136
      %v1139 = vshrl.u32 %v1007, 16
      %v1141 = vshll.u32 %v1007, 16
      %v1143 = vrot.slane %v1141, 1
      %v1144 = vor.u32 %v1139, %v1143
      %v1146 = vshll.u32 %v1055, 16
      %v1148 = vrot.slane %v1146, 1
      %v1149 = vsel %vm1065, %v1144, %v1148
      %v1151 = vshrl.u32 %v1008, 16
      %v1153 = vshll.u32 %v1008, 16
      %v1155 = vrot.slane %v1153, 1
      %v1156 = vor.u32 %v1151, %v1155
      %v1158 = vshll.u32 %v1056, 16
      %v1160 = vrot.slane %v1158, 1
      %v1161 = vsel %vm1065, %v1156, %v1160
      %v1163 = vshrl.u32 %v1009, 16
      %v1165 = vshll.u32 %v1009, 16
      %v1167 = vrot.slane %v1165, 1
      %v1168 = vor.u32 %v1163, %v1167
      %v1170 = vshll.u32 %v1057, 16
      %v1172 = vrot.slane %v1170, 1
      %v1173 = vsel %vm1065, %v1168, %v1172
      %v1175 = vshrl.u32 %v1010, 16
      %v1177 = vshll.u32 %v1010, 16
      %v1179 = vrot.slane %v1177, 1
      %v1180 = vor.u32 %v1175, %v1179
      %v1182 = vshll.u32 %v1058, 16
      %v1184 = vrot.slane %v1182, 1
      %v1185 = vsel %vm1065, %v1180, %v1184
      %v1187 = vshrl.u32 %v1011, 16
      %v1189 = vshll.u32 %v1011, 16
      %v1191 = vrot.slane %v1189, 1
      %v1192 = vor.u32 %v1187, %v1191
      %v1194 = vshll.u32 %v1059, 16
      %v1196 = vrot.slane %v1194, 1
      %v1197 = vsel %vm1065, %v1192, %v1196
      %v1199 = vshrl.u32 %v1012, 16
      %v1201 = vshll.u32 %v1012, 16
      %v1203 = vrot.slane %v1201, 1
      %v1204 = vor.u32 %v1199, %v1203
      %v1206 = vshll.u32 %v1060, 16
      %v1208 = vrot.slane %v1206, 1
      %v1209 = vsel %vm1065, %v1204, %v1208
      %v1211 = vshrl.u32 %v1013, 16
      %v1213 = vshll.u32 %v1013, 16
      %v1215 = vrot.slane %v1213, 1
      %v1216 = vor.u32 %v1211, %v1215
      %v1218 = vshll.u32 %v1061, 16
      %v1220 = vrot.slane %v1218, 1
      %v1221 = vsel %vm1065, %v1216, %v1220
      %v1223 = vshrl.u32 %v1014, 16
      %v1225 = vshll.u32 %v1014, 16
      %v1227 = vrot.slane %v1225, 1
      %v1228 = vor.u32 %v1223, %v1227
      %v1230 = vshll.u32 %v1062, 16
      %v1232 = vrot.slane %v1230, 1
      %v1233 = vsel %vm1065, %v1228, %v1232
      %v1235 = vshrl.u32 %v1015, 16
      %v1237 = vshll.u32 %v1015, 16
      %v1239 = vrot.slane %v1237, 1
      %v1240 = vor.u32 %v1235, %v1239
      %v1242 = vshll.u32 %v1063, 16
      %v1244 = vrot.slane %v1242, 1
      %v1245 = vsel %vm1065, %v1240, %v1244
      %v1247 = vshrl.u32 %v1016, 16
      %v1249 = vshll.u32 %v1016, 16
      %v1251 = vrot.slane %v1249, 1
      %v1252 = vor.u32 %v1247, %v1251
      %v1254 = vshll.u32 %v1064, 16
      %v1256 = vrot.slane %v1254, 1
      %v1257 = vsel %vm1065, %v1252, %v1256
      %1258 = vrot.lane.b32.xlu0 %v1077, 4
      %v1259 = vpop.permute.xlu0 %1258
      %1260 = vrot.lane.b32.xlu0 %v1089, 4
      %v1261 = vpop.permute.xlu0 %1260
      %1262 = vrot.lane.b32.xlu0 %v1101, 4
      %v1263 = vpop.permute.xlu0 %1262
      %1264 = vrot.lane.b32.xlu0 %v1113, 4
      %v1265 = vpop.permute.xlu0 %1264
      %1266 = vrot.lane.b32.xlu0 %v1125, 4
      %v1267 = vpop.permute.xlu0 %1266
      %1268 = vrot.lane.b32.xlu0 %v1137, 4
      %v1269 = vpop.permute.xlu0 %1268
      %1270 = vrot.lane.b32.xlu0 %v1149, 4
      %v1271 = vpop.permute.xlu0 %1270
      %1272 = vrot.lane.b32.xlu0 %v1161, 4
      %v1273 = vpop.permute.xlu0 %1272
      %1274 = vrot.lane.b32.xlu0 %v1173, 4
      %v1275 = vpop.permute.xlu0 %1274
      %1276 = vrot.lane.b32.xlu0 %v1185, 4
      %v1277 = vpop.permute.xlu0 %1276
      %1278 = vrot.lane.b32.xlu0 %v1197, 4
      %v1279 = vpop.permute.xlu0 %1278
      %1280 = vrot.lane.b32.xlu0 %v1209, 4
      %v1281 = vpop.permute.xlu0 %1280
      %1282 = vrot.lane.b32.xlu0 %v1221, 4
      %v1283 = vpop.permute.xlu0 %1282
      %1284 = vrot.lane.b32.xlu0 %v1233, 4
      %v1285 = vpop.permute.xlu0 %1284
      %1286 = vrot.lane.b32.xlu0 %v1245, 4
      %v1287 = vpop.permute.xlu0 %1286
      %1288 = vrot.lane.b32.xlu0 %v1257, 4
      %v1289 = vpop.permute.xlu0 %1288
      %vm1290 = vcmask 1046528
      %v1291 = vrot.slane %v1001, 1
      %v1292 = vrot.slane %v1049, 1
      %v1293 = vsel %vm1290, %v1291, %v1292
      %v1294 = vrot.slane %v1002, 1
      %v1295 = vrot.slane %v1050, 1
      %v1296 = vsel %vm1290, %v1294, %v1295
      %v1297 = vrot.slane %v1003, 1
      %v1298 = vrot.slane %v1051, 1
      %v1299 = vsel %vm1290, %v1297, %v1298
      %v1300 = vrot.slane %v1004, 1
      %v1301 = vrot.slane %v1052, 1
      %v1302 = vsel %vm1290, %v1300, %v1301
      %v1303 = vrot.slane %v1005, 1
      %v1304 = vrot.slane %v1053, 1
      %v1305 = vsel %vm1290, %v1303, %v1304
      %v1306 = vrot.slane %v1006, 1
      %v1307 = vrot.slane %v1054, 1
      %v1308 = vsel %vm1290, %v1306, %v1307
      %v1309 = vrot.slane %v1007, 1
      %v1310 = vrot.slane %v1055, 1
      %v1311 = vsel %vm1290, %v1309, %v1310
      %v1312 = vrot.slane %v1008, 1
      %v1313 = vrot.slane %v1056, 1
      %v1314 = vsel %vm1290, %v1312, %v1313
      %v1315 = vrot.slane %v1009, 1
      %v1316 = vrot.slane %v1057, 1
      %v1317 = vsel %vm1290, %v1315, %v1316
      %v1318 = vrot.slane %v1010, 1
      %v1319 = vrot.slane %v1058, 1
      %v1320 = vsel %vm1290, %v1318, %v1319
      %v1321 = vrot.slane %v1011, 1
      %v1322 = vrot.slane %v1059, 1
      %v1323 = vsel %vm1290, %v1321, %v1322
      %v1324 = vrot.slane %v1012, 1
      %v1325 = vrot.slane %v1060, 1
      %v1326 = vsel %vm1290, %v1324, %v1325
      %v1327 = vrot.slane %v1013, 1
      %v1328 = vrot.slane %v1061, 1
      %v1329 = vsel %vm1290, %v1327, %v1328
      %v1330 = vrot.slane %v1014, 1
      %v1331 = vrot.slane %v1062, 1
      %v1332 = vsel %vm1290, %v1330, %v1331
      %v1333 = vrot.slane %v1015, 1
      %v1334 = vrot.slane %v1063, 1
      %v1335 = vsel %vm1290, %v1333, %v1334
      %v1336 = vrot.slane %v1016, 1
      %v1337 = vrot.slane %v1064, 1
      %v1338 = vsel %vm1290, %v1336, %v1337
      %1339 = vrot.lane.b32.xlu0 %v1293, 8
      %v1340 = vpop.permute.xlu0 %1339
      %1341 = vrot.lane.b32.xlu0 %v1296, 8
      %v1342 = vpop.permute.xlu0 %1341
      %1343 = vrot.lane.b32.xlu0 %v1299, 8
      %v1344 = vpop.permute.xlu0 %1343
      %1345 = vrot.lane.b32.xlu0 %v1302, 8
      %v1346 = vpop.permute.xlu0 %1345
      %1347 = vrot.lane.b32.xlu0 %v1305, 8
      %v1348 = vpop.permute.xlu0 %1347
      %1349 = vrot.lane.b32.xlu0 %v1308, 8
      %v1350 = vpop.permute.xlu0 %1349
      %1351 = vrot.lane.b32.xlu0 %v1311, 8
      %v1352 = vpop.permute.xlu0 %1351
      %1353 = vrot.lane.b32.xlu0 %v1314, 8
      %v1354 = vpop.permute.xlu0 %1353
      %1355 = vrot.lane.b32.xlu0 %v1317, 8
      %v1356 = vpop.permute.xlu0 %1355
      %1357 = vrot.lane.b32.xlu0 %v1320, 8
      %v1358 = vpop.permute.xlu0 %1357
      %1359 = vrot.lane.b32.xlu0 %v1323, 8
      %v1360 = vpop.permute.xlu0 %1359
      %1361 = vrot.lane.b32.xlu0 %v1326, 8
      %v1362 = vpop.permute.xlu0 %1361
      %1363 = vrot.lane.b32.xlu0 %v1329, 8
      %v1364 = vpop.permute.xlu0 %1363
      %1365 = vrot.lane.b32.xlu0 %v1332, 8
      %v1366 = vpop.permute.xlu0 %1365
      %1367 = vrot.lane.b32.xlu0 %v1335, 8
      %v1368 = vpop.permute.xlu0 %1367
      %1369 = vrot.lane.b32.xlu0 %v1338, 8
      %v1370 = vpop.permute.xlu0 %1369
      %v1403 = vunpack.c.l.b16 %v837
      %v1404 = vunpack.c.l.b16 %v838
      %v1405 = vunpack.c.l.b16 %v840
      %v1406 = vunpack.c.l.b16 %v841
      %v1407 = vunpack.c.l.b16 %v843
      %v1408 = vunpack.c.l.b16 %v844
      %v1409 = vunpack.c.l.b16 %v846
      %v1410 = vunpack.c.l.b16 %v847
      %v1411 = vunpack.c.l.b16 %v849
      %v1412 = vunpack.c.l.b16 %v850
      %v1413 = vunpack.c.l.b16 %v852
      %v1414 = vunpack.c.l.b16 %v853
      %v1415 = vunpack.c.l.b16 %v855
      %v1416 = vunpack.c.l.b16 %v856
      %v1417 = vunpack.c.l.b16 %v858
      %v1418 = vunpack.c.l.b16 %v859
      %v1419 = vunpack.c.l.b16 %v861
      %v1420 = vunpack.c.l.b16 %v862
      %v1421 = vunpack.c.l.b16 %v864
      %v1422 = vunpack.c.l.b16 %v865
      %v1423 = vunpack.c.l.b16 %v867
      %v1424 = vunpack.c.l.b16 %v868
      %v1425 = vunpack.c.l.b16 %v870
      %v1426 = vunpack.c.l.b16 %v871
      %v1427 = vunpack.c.l.b16 %v873
      %v1428 = vunpack.c.l.b16 %v874
      %v1429 = vunpack.c.l.b16 %v876
      %v1430 = vunpack.c.l.b16 %v877
      %v1431 = vunpack.c.l.b16 %v879
      %v1432 = vunpack.c.l.b16 %v880
      %v1433 = vunpack.c.l.b16 %v882
      %v1434 = vunpack.c.l.b16 %v883
      %v1435 = vpack.c.b16 %v1404, %v1403
      %v1436 = vpack.c.b16 %v1406, %v1405
      %v1437 = vpack.c.b16 %v1408, %v1407
      %v1438 = vpack.c.b16 %v1410, %v1409
      %v1439 = vpack.c.b16 %v1412, %v1411
      %v1440 = vpack.c.b16 %v1414, %v1413
      %v1441 = vpack.c.b16 %v1416, %v1415
      %v1442 = vpack.c.b16 %v1418, %v1417
      %v1443 = vpack.c.b16 %v1420, %v1419
      %v1444 = vpack.c.b16 %v1422, %v1421
      %v1445 = vpack.c.b16 %v1424, %v1423
      %v1446 = vpack.c.b16 %v1426, %v1425
      %v1447 = vpack.c.b16 %v1428, %v1427
      %v1448 = vpack.c.b16 %v1430, %v1429
      %v1449 = vpack.c.b16 %v1432, %v1431
      %v1450 = vpack.c.b16 %v1434, %v1433
      %1451 = vrot.lane.b32.xlu0 %v1435, 12
      %v1452 = vpop.permute.xlu0 %1451
      %1453 = vrot.lane.b32.xlu0 %v1436, 12
      %v1454 = vpop.permute.xlu0 %1453
      %1455 = vrot.lane.b32.xlu0 %v1437, 12
      %v1456 = vpop.permute.xlu0 %1455
      %1457 = vrot.lane.b32.xlu0 %v1438, 12
      %v1458 = vpop.permute.xlu0 %1457
      %1459 = vrot.lane.b32.xlu0 %v1439, 12
      %v1460 = vpop.permute.xlu0 %1459
      %1461 = vrot.lane.b32.xlu0 %v1440, 12
      %v1462 = vpop.permute.xlu0 %1461
      %1463 = vrot.lane.b32.xlu0 %v1441, 12
      %v1464 = vpop.permute.xlu0 %1463
      %1465 = vrot.lane.b32.xlu0 %v1442, 12
      %v1466 = vpop.permute.xlu0 %1465
      %1467 = vrot.lane.b32.xlu0 %v1443, 12
      %v1468 = vpop.permute.xlu0 %1467
      %1469 = vrot.lane.b32.xlu0 %v1444, 12
      %v1470 = vpop.permute.xlu0 %1469
      %1471 = vrot.lane.b32.xlu0 %v1445, 12
      %v1472 = vpop.permute.xlu0 %1471
      %1473 = vrot.lane.b32.xlu0 %v1446, 12
      %v1474 = vpop.permute.xlu0 %1473
      %1475 = vrot.lane.b32.xlu0 %v1447, 12
      %v1476 = vpop.permute.xlu0 %1475
      %1477 = vrot.lane.b32.xlu0 %v1448, 12
      %v1478 = vpop.permute.xlu0 %1477
      %1479 = vrot.lane.b32.xlu0 %v1449, 12
      %v1480 = vpop.permute.xlu0 %1479
      %1481 = vrot.lane.b32.xlu0 %v1450, 12
      %v1482 = vpop.permute.xlu0 %1481
      %v1499 = vunpack.c.l.b16 %v839
      %v1500 = vunpack.c.l.b16 %v842
      %v1501 = vunpack.c.l.b16 %v845
      %v1502 = vunpack.c.l.b16 %v848
      %v1503 = vunpack.c.l.b16 %v851
      %v1504 = vunpack.c.l.b16 %v854
      %v1505 = vunpack.c.l.b16 %v857
      %v1506 = vunpack.c.l.b16 %v860
      %v1507 = vunpack.c.l.b16 %v863
      %v1508 = vunpack.c.l.b16 %v866
      %v1509 = vunpack.c.l.b16 %v869
      %v1510 = vunpack.c.l.b16 %v872
      %v1511 = vunpack.c.l.b16 %v875
      %v1512 = vunpack.c.l.b16 %v878
      %v1513 = vunpack.c.l.b16 %v881
      %v1514 = vunpack.c.l.b16 %v884
      %v1515 = vpack.c.b16 %v1499, %v1499
      %v1516 = vpack.c.b16 %v1500, %v1500
      %v1517 = vpack.c.b16 %v1501, %v1501
      %v1518 = vpack.c.b16 %v1502, %v1502
      %v1519 = vpack.c.b16 %v1503, %v1503
      %v1520 = vpack.c.b16 %v1504, %v1504
      %v1521 = vpack.c.b16 %v1505, %v1505
      %v1522 = vpack.c.b16 %v1506, %v1506
      %v1523 = vpack.c.b16 %v1507, %v1507
      %v1524 = vpack.c.b16 %v1508, %v1508
      %v1525 = vpack.c.b16 %v1509, %v1509
      %v1526 = vpack.c.b16 %v1510, %v1510
      %v1527 = vpack.c.b16 %v1511, %v1511
      %v1528 = vpack.c.b16 %v1512, %v1512
      %v1529 = vpack.c.b16 %v1513, %v1513
      %v1530 = vpack.c.b16 %v1514, %v1514
      %v1532 = vshrl.u32 %v1435, 16
      %v1534 = vshll.u32 %v1435, 16
      %v1536 = vrot.slane %v1534, 1
      %v1537 = vor.u32 %v1532, %v1536
      %v1539 = vshll.u32 %v1515, 16
      %v1541 = vrot.slane %v1539, 1
      %v1542 = vsel %vm1065, %v1537, %v1541
      %v1544 = vshrl.u32 %v1436, 16
      %v1546 = vshll.u32 %v1436, 16
      %v1548 = vrot.slane %v1546, 1
      %v1549 = vor.u32 %v1544, %v1548
      %v1551 = vshll.u32 %v1516, 16
      %v1553 = vrot.slane %v1551, 1
      %v1554 = vsel %vm1065, %v1549, %v1553
      %v1556 = vshrl.u32 %v1437, 16
      %v1558 = vshll.u32 %v1437, 16
      %v1560 = vrot.slane %v1558, 1
      %v1561 = vor.u32 %v1556, %v1560
      %v1563 = vshll.u32 %v1517, 16
      %v1565 = vrot.slane %v1563, 1
      %v1566 = vsel %vm1065, %v1561, %v1565
      %v1568 = vshrl.u32 %v1438, 16
      %v1570 = vshll.u32 %v1438, 16
      %v1572 = vrot.slane %v1570, 1
      %v1573 = vor.u32 %v1568, %v1572
      %v1575 = vshll.u32 %v1518, 16
      %v1577 = vrot.slane %v1575, 1
      %v1578 = vsel %vm1065, %v1573, %v1577
      %v1580 = vshrl.u32 %v1439, 16
      %v1582 = vshll.u32 %v1439, 16
      %v1584 = vrot.slane %v1582, 1
      %v1585 = vor.u32 %v1580, %v1584
      %v1587 = vshll.u32 %v1519, 16
      %v1589 = vrot.slane %v1587, 1
      %v1590 = vsel %vm1065, %v1585, %v1589
      %v1592 = vshrl.u32 %v1440, 16
      %v1594 = vshll.u32 %v1440, 16
      %v1596 = vrot.slane %v1594, 1
      %v1597 = vor.u32 %v1592, %v1596
      %v1599 = vshll.u32 %v1520, 16
      %v1601 = vrot.slane %v1599, 1
      %v1602 = vsel %vm1065, %v1597, %v1601
      %v1604 = vshrl.u32 %v1441, 16
      %v1606 = vshll.u32 %v1441, 16
      %v1608 = vrot.slane %v1606, 1
      %v1609 = vor.u32 %v1604, %v1608
      %v1611 = vshll.u32 %v1521, 16
      %v1613 = vrot.slane %v1611, 1
      %v1614 = vsel %vm1065, %v1609, %v1613
      %v1616 = vshrl.u32 %v1442, 16
      %v1618 = vshll.u32 %v1442, 16
      %v1620 = vrot.slane %v1618, 1
      %v1621 = vor.u32 %v1616, %v1620
      %v1623 = vshll.u32 %v1522, 16
      %v1625 = vrot.slane %v1623, 1
      %v1626 = vsel %vm1065, %v1621, %v1625
      %v1628 = vshrl.u32 %v1443, 16
      %v1630 = vshll.u32 %v1443, 16
      %v1632 = vrot.slane %v1630, 1
      %v1633 = vor.u32 %v1628, %v1632
      %v1635 = vshll.u32 %v1523, 16
      %v1637 = vrot.slane %v1635, 1
      %v1638 = vsel %vm1065, %v1633, %v1637
      %v1640 = vshrl.u32 %v1444, 16
      %v1642 = vshll.u32 %v1444, 16
      %v1644 = vrot.slane %v1642, 1
      %v1645 = vor.u32 %v1640, %v1644
      %v1647 = vshll.u32 %v1524, 16
      %v1649 = vrot.slane %v1647, 1
      %v1650 = vsel %vm1065, %v1645, %v1649
      %v1652 = vshrl.u32 %v1445, 16
      %v1654 = vshll.u32 %v1445, 16
      %v1656 = vrot.slane %v1654, 1
      %v1657 = vor.u32 %v1652, %v1656
      %v1659 = vshll.u32 %v1525, 16
      %v1661 = vrot.slane %v1659, 1
      %v1662 = vsel %vm1065, %v1657, %v1661
      %v1664 = vshrl.u32 %v1446, 16
      %v1666 = vshll.u32 %v1446, 16
      %v1668 = vrot.slane %v1666, 1
      %v1669 = vor.u32 %v1664, %v1668
      %v1671 = vshll.u32 %v1526, 16
      %v1673 = vrot.slane %v1671, 1
      %v1674 = vsel %vm1065, %v1669, %v1673
      %v1676 = vshrl.u32 %v1447, 16
      %v1678 = vshll.u32 %v1447, 16
      %v1680 = vrot.slane %v1678, 1
      %v1681 = vor.u32 %v1676, %v1680
      %v1683 = vshll.u32 %v1527, 16
      %v1685 = vrot.slane %v1683, 1
      %v1686 = vsel %vm1065, %v1681, %v1685
      %v1688 = vshrl.u32 %v1448, 16
      %v1690 = vshll.u32 %v1448, 16
      %v1692 = vrot.slane %v1690, 1
      %v1693 = vor.u32 %v1688, %v1692
      %v1695 = vshll.u32 %v1528, 16
      %v1697 = vrot.slane %v1695, 1
      %v1698 = vsel %vm1065, %v1693, %v1697
      %v1700 = vshrl.u32 %v1449, 16
      %v1702 = vshll.u32 %v1449, 16
      %v1704 = vrot.slane %v1702, 1
      %v1705 = vor.u32 %v1700, %v1704
      %v1707 = vshll.u32 %v1529, 16
      %v1709 = vrot.slane %v1707, 1
      %v1710 = vsel %vm1065, %v1705, %v1709
      %v1712 = vshrl.u32 %v1450, 16
      %v1714 = vshll.u32 %v1450, 16
      %v1716 = vrot.slane %v1714, 1
      %v1717 = vor.u32 %v1712, %v1716
      %v1719 = vshll.u32 %v1530, 16
      %v1721 = vrot.slane %v1719, 1
      %v1722 = vsel %vm1065, %v1717, %v1721
      %1723 = vrot.lane.b32.xlu0 %v1542, 16
      %v1724 = vpop.permute.xlu0 %1723
      %1725 = vrot.lane.b32.xlu0 %v1554, 16
      %v1726 = vpop.permute.xlu0 %1725
      %1727 = vrot.lane.b32.xlu0 %v1566, 16
      %v1728 = vpop.permute.xlu0 %1727
      %1729 = vrot.lane.b32.xlu0 %v1578, 16
      %v1730 = vpop.permute.xlu0 %1729
      %1731 = vrot.lane.b32.xlu0 %v1590, 16
      %v1732 = vpop.permute.xlu0 %1731
      %1733 = vrot.lane.b32.xlu0 %v1602, 16
      %v1734 = vpop.permute.xlu0 %1733
      %1735 = vrot.lane.b32.xlu0 %v1614, 16
      %v1736 = vpop.permute.xlu0 %1735
      %1737 = vrot.lane.b32.xlu0 %v1626, 16
      %v1738 = vpop.permute.xlu0 %1737
      %1739 = vrot.lane.b32.xlu0 %v1638, 16
      %v1740 = vpop.permute.xlu0 %1739
      %1741 = vrot.lane.b32.xlu0 %v1650, 16
      %v1742 = vpop.permute.xlu0 %1741
      %1743 = vrot.lane.b32.xlu0 %v1662, 16
      %v1744 = vpop.permute.xlu0 %1743
      %1745 = vrot.lane.b32.xlu0 %v1674, 16
      %v1746 = vpop.permute.xlu0 %1745
      %1747 = vrot.lane.b32.xlu0 %v1686, 16
      %v1748 = vpop.permute.xlu0 %1747
      %1749 = vrot.lane.b32.xlu0 %v1698, 16
      %v1750 = vpop.permute.xlu0 %1749
      %1751 = vrot.lane.b32.xlu0 %v1710, 16
      %v1752 = vpop.permute.xlu0 %1751
      %1753 = vrot.lane.b32.xlu0 %v1722, 16
      %v1754 = vpop.permute.xlu0 %1753
      %v1755 = vrot.slane %v1435, 1
      %v1756 = vrot.slane %v1515, 1
      %v1757 = vsel %vm1290, %v1755, %v1756
      %v1758 = vrot.slane %v1436, 1
      %v1759 = vrot.slane %v1516, 1
      %v1760 = vsel %vm1290, %v1758, %v1759
      %v1761 = vrot.slane %v1437, 1
      %v1762 = vrot.slane %v1517, 1
      %v1763 = vsel %vm1290, %v1761, %v1762
      %v1764 = vrot.slane %v1438, 1
      %v1765 = vrot.slane %v1518, 1
      %v1766 = vsel %vm1290, %v1764, %v1765
      %v1767 = vrot.slane %v1439, 1
      %v1768 = vrot.slane %v1519, 1
      %v1769 = vsel %vm1290, %v1767, %v1768
      %v1770 = vrot.slane %v1440, 1
      %v1771 = vrot.slane %v1520, 1
      %v1772 = vsel %vm1290, %v1770, %v1771
      %v1773 = vrot.slane %v1441, 1
      %v1774 = vrot.slane %v1521, 1
      %v1775 = vsel %vm1290, %v1773, %v1774
      %v1776 = vrot.slane %v1442, 1
      %v1777 = vrot.slane %v1522, 1
      %v1778 = vsel %vm1290, %v1776, %v1777
      %v1779 = vrot.slane %v1443, 1
      %v1780 = vrot.slane %v1523, 1
      %v1781 = vsel %vm1290, %v1779, %v1780
      %v1782 = vrot.slane %v1444, 1
      %v1783 = vrot.slane %v1524, 1
      %v1784 = vsel %vm1290, %v1782, %v1783
      %v1785 = vrot.slane %v1445, 1
      %v1786 = vrot.slane %v1525, 1
      %v1787 = vsel %vm1290, %v1785, %v1786
      %v1788 = vrot.slane %v1446, 1
      %v1789 = vrot.slane %v1526, 1
      %v1790 = vsel %vm1290, %v1788, %v1789
      %v1791 = vrot.slane %v1447, 1
      %v1792 = vrot.slane %v1527, 1
      %v1793 = vsel %vm1290, %v1791, %v1792
      %v1794 = vrot.slane %v1448, 1
      %v1795 = vrot.slane %v1528, 1
      %v1796 = vsel %vm1290, %v1794, %v1795
      %v1797 = vrot.slane %v1449, 1
      %v1798 = vrot.slane %v1529, 1
      %v1799 = vsel %vm1290, %v1797, %v1798
      %v1800 = vrot.slane %v1450, 1
      %v1801 = vrot.slane %v1530, 1
      %v1802 = vsel %vm1290, %v1800, %v1801
      %1803 = vrot.lane.b32.xlu0 %v1757, 20
      %v1804 = vpop.permute.xlu0 %1803
      %1805 = vrot.lane.b32.xlu0 %v1760, 20
      %v1806 = vpop.permute.xlu0 %1805
      %1807 = vrot.lane.b32.xlu0 %v1763, 20
      %v1808 = vpop.permute.xlu0 %1807
      %1809 = vrot.lane.b32.xlu0 %v1766, 20
      %v1810 = vpop.permute.xlu0 %1809
      %1811 = vrot.lane.b32.xlu0 %v1769, 20
      %v1812 = vpop.permute.xlu0 %1811
      %1813 = vrot.lane.b32.xlu0 %v1772, 20
      %v1814 = vpop.permute.xlu0 %1813
      %1815 = vrot.lane.b32.xlu0 %v1775, 20
      %v1816 = vpop.permute.xlu0 %1815
      %1817 = vrot.lane.b32.xlu0 %v1778, 20
      %v1818 = vpop.permute.xlu0 %1817
      %1819 = vrot.lane.b32.xlu0 %v1781, 20
      %v1820 = vpop.permute.xlu0 %1819
      %1821 = vrot.lane.b32.xlu0 %v1784, 20
      %v1822 = vpop.permute.xlu0 %1821
      %1823 = vrot.lane.b32.xlu0 %v1787, 20
      %v1824 = vpop.permute.xlu0 %1823
      %1825 = vrot.lane.b32.xlu0 %v1790, 20
      %v1826 = vpop.permute.xlu0 %1825
      %1827 = vrot.lane.b32.xlu0 %v1793, 20
      %v1828 = vpop.permute.xlu0 %1827
      %1829 = vrot.lane.b32.xlu0 %v1796, 20
      %v1830 = vpop.permute.xlu0 %1829
      %1831 = vrot.lane.b32.xlu0 %v1799, 20
      %v1832 = vpop.permute.xlu0 %1831
      %1833 = vrot.lane.b32.xlu0 %v1802, 20
      %v1834 = vpop.permute.xlu0 %1833
      %v1867 = vunpack.c.l.b16 %v889
      %v1868 = vunpack.c.l.b16 %v890
      %v1869 = vunpack.c.l.b16 %v892
      %v1870 = vunpack.c.l.b16 %v893
      %v1871 = vunpack.c.l.b16 %v895
      %v1872 = vunpack.c.l.b16 %v896
      %v1873 = vunpack.c.l.b16 %v898
      %v1874 = vunpack.c.l.b16 %v899
      %v1875 = vunpack.c.l.b16 %v901
      %v1876 = vunpack.c.l.b16 %v902
      %v1877 = vunpack.c.l.b16 %v904
      %v1878 = vunpack.c.l.b16 %v905
      %v1879 = vunpack.c.l.b16 %v907
      %v1880 = vunpack.c.l.b16 %v908
      %v1881 = vunpack.c.l.b16 %v910
      %v1882 = vunpack.c.l.b16 %v911
      %v1883 = vunpack.c.l.b16 %v913
      %v1884 = vunpack.c.l.b16 %v914
      %v1885 = vunpack.c.l.b16 %v916
      %v1886 = vunpack.c.l.b16 %v917
      %v1887 = vunpack.c.l.b16 %v919
      %v1888 = vunpack.c.l.b16 %v920
      %v1889 = vunpack.c.l.b16 %v922
      %v1890 = vunpack.c.l.b16 %v923
      %v1891 = vunpack.c.l.b16 %v925
      %v1892 = vunpack.c.l.b16 %v926
      %v1893 = vunpack.c.l.b16 %v928
      %v1894 = vunpack.c.l.b16 %v929
      %v1895 = vunpack.c.l.b16 %v931
      %v1896 = vunpack.c.l.b16 %v932
      %v1897 = vunpack.c.l.b16 %v934
      %v1898 = vunpack.c.l.b16 %v935
      %v1899 = vpack.c.b16 %v1868, %v1867
      %v1900 = vpack.c.b16 %v1870, %v1869
      %v1901 = vpack.c.b16 %v1872, %v1871
      %v1902 = vpack.c.b16 %v1874, %v1873
      %v1903 = vpack.c.b16 %v1876, %v1875
      %v1904 = vpack.c.b16 %v1878, %v1877
      %v1905 = vpack.c.b16 %v1880, %v1879
      %v1906 = vpack.c.b16 %v1882, %v1881
      %v1907 = vpack.c.b16 %v1884, %v1883
      %v1908 = vpack.c.b16 %v1886, %v1885
      %v1909 = vpack.c.b16 %v1888, %v1887
      %v1910 = vpack.c.b16 %v1890, %v1889
      %v1911 = vpack.c.b16 %v1892, %v1891
      %v1912 = vpack.c.b16 %v1894, %v1893
      %v1913 = vpack.c.b16 %v1896, %v1895
      %v1914 = vpack.c.b16 %v1898, %v1897
      %1915 = vrot.lane.b32.xlu0 %v1899, 24
      %v1916 = vpop.permute.xlu0 %1915
      %1917 = vrot.lane.b32.xlu0 %v1900, 24
      %v1918 = vpop.permute.xlu0 %1917
      %1919 = vrot.lane.b32.xlu0 %v1901, 24
      %v1920 = vpop.permute.xlu0 %1919
      %1921 = vrot.lane.b32.xlu0 %v1902, 24
      %v1922 = vpop.permute.xlu0 %1921
      %1923 = vrot.lane.b32.xlu0 %v1903, 24
      %v1924 = vpop.permute.xlu0 %1923
      %1925 = vrot.lane.b32.xlu0 %v1904, 24
      %v1926 = vpop.permute.xlu0 %1925
      %1927 = vrot.lane.b32.xlu0 %v1905, 24
      %v1928 = vpop.permute.xlu0 %1927
      %1929 = vrot.lane.b32.xlu0 %v1906, 24
      %v1930 = vpop.permute.xlu0 %1929
      %1931 = vrot.lane.b32.xlu0 %v1907, 24
      %v1932 = vpop.permute.xlu0 %1931
      %1933 = vrot.lane.b32.xlu0 %v1908, 24
      %v1934 = vpop.permute.xlu0 %1933
      %1935 = vrot.lane.b32.xlu0 %v1909, 24
      %v1936 = vpop.permute.xlu0 %1935
      %1937 = vrot.lane.b32.xlu0 %v1910, 24
      %v1938 = vpop.permute.xlu0 %1937
      %1939 = vrot.lane.b32.xlu0 %v1911, 24
      %v1940 = vpop.permute.xlu0 %1939
      %1941 = vrot.lane.b32.xlu0 %v1912, 24
      %v1942 = vpop.permute.xlu0 %1941
      %1943 = vrot.lane.b32.xlu0 %v1913, 24
      %v1944 = vpop.permute.xlu0 %1943
      %1945 = vrot.lane.b32.xlu0 %v1914, 24
      %v1946 = vpop.permute.xlu0 %1945
      %v1963 = vunpack.c.l.b16 %v891
      %v1964 = vunpack.c.l.b16 %v894
      %v1965 = vunpack.c.l.b16 %v897
      %v1966 = vunpack.c.l.b16 %v900
      %v1967 = vunpack.c.l.b16 %v903
      %v1968 = vunpack.c.l.b16 %v906
      %v1969 = vunpack.c.l.b16 %v909
      %v1970 = vunpack.c.l.b16 %v912
      %v1971 = vunpack.c.l.b16 %v915
      %v1972 = vunpack.c.l.b16 %v918
      %v1973 = vunpack.c.l.b16 %v921
      %v1974 = vunpack.c.l.b16 %v924
      %v1975 = vunpack.c.l.b16 %v927
      %v1976 = vunpack.c.l.b16 %v930
      %v1977 = vunpack.c.l.b16 %v933
      %v1978 = vunpack.c.l.b16 %v936
      %v1979 = vpack.c.b16 %v1963, %v1963
      %v1980 = vpack.c.b16 %v1964, %v1964
      %v1981 = vpack.c.b16 %v1965, %v1965
      %v1982 = vpack.c.b16 %v1966, %v1966
      %v1983 = vpack.c.b16 %v1967, %v1967
      %v1984 = vpack.c.b16 %v1968, %v1968
      %v1985 = vpack.c.b16 %v1969, %v1969
      %v1986 = vpack.c.b16 %v1970, %v1970
      %v1987 = vpack.c.b16 %v1971, %v1971
      %v1988 = vpack.c.b16 %v1972, %v1972
      %v1989 = vpack.c.b16 %v1973, %v1973
      %v1990 = vpack.c.b16 %v1974, %v1974
      %v1991 = vpack.c.b16 %v1975, %v1975
      %v1992 = vpack.c.b16 %v1976, %v1976
      %v1993 = vpack.c.b16 %v1977, %v1977
      %v1994 = vpack.c.b16 %v1978, %v1978
      %v1996 = vshrl.u32 %v1899, 16
      %v1998 = vshll.u32 %v1899, 16
      %v2000 = vrot.slane %v1998, 1
      %v2001 = vor.u32 %v1996, %v2000
      %v2003 = vshll.u32 %v1979, 16
      %v2005 = vrot.slane %v2003, 1
      %v2006 = vsel %vm1065, %v2001, %v2005
      %v2008 = vshrl.u32 %v1900, 16
      %v2010 = vshll.u32 %v1900, 16
      %v2012 = vrot.slane %v2010, 1
      %v2013 = vor.u32 %v2008, %v2012
      %v2015 = vshll.u32 %v1980, 16
      %v2017 = vrot.slane %v2015, 1
      %v2018 = vsel %vm1065, %v2013, %v2017
      %v2020 = vshrl.u32 %v1901, 16
      %v2022 = vshll.u32 %v1901, 16
      %v2024 = vrot.slane %v2022, 1
      %v2025 = vor.u32 %v2020, %v2024
      %v2027 = vshll.u32 %v1981, 16
      %v2029 = vrot.slane %v2027, 1
      %v2030 = vsel %vm1065, %v2025, %v2029
      %v2032 = vshrl.u32 %v1902, 16
      %v2034 = vshll.u32 %v1902, 16
      %v2036 = vrot.slane %v2034, 1
      %v2037 = vor.u32 %v2032, %v2036
      %v2039 = vshll.u32 %v1982, 16
      %v2041 = vrot.slane %v2039, 1
      %v2042 = vsel %vm1065, %v2037, %v2041
      %v2044 = vshrl.u32 %v1903, 16
      %v2046 = vshll.u32 %v1903, 16
      %v2048 = vrot.slane %v2046, 1
      %v2049 = vor.u32 %v2044, %v2048
      %v2051 = vshll.u32 %v1983, 16
      %v2053 = vrot.slane %v2051, 1
      %v2054 = vsel %vm1065, %v2049, %v2053
      %v2056 = vshrl.u32 %v1904, 16
      %v2058 = vshll.u32 %v1904, 16
      %v2060 = vrot.slane %v2058, 1
      %v2061 = vor.u32 %v2056, %v2060
      %v2063 = vshll.u32 %v1984, 16
      %v2065 = vrot.slane %v2063, 1
      %v2066 = vsel %vm1065, %v2061, %v2065
      %v2068 = vshrl.u32 %v1905, 16
      %v2070 = vshll.u32 %v1905, 16
      %v2072 = vrot.slane %v2070, 1
      %v2073 = vor.u32 %v2068, %v2072
      %v2075 = vshll.u32 %v1985, 16
      %v2077 = vrot.slane %v2075, 1
      %v2078 = vsel %vm1065, %v2073, %v2077
      %v2080 = vshrl.u32 %v1906, 16
      %v2082 = vshll.u32 %v1906, 16
      %v2084 = vrot.slane %v2082, 1
      %v2085 = vor.u32 %v2080, %v2084
      %v2087 = vshll.u32 %v1986, 16
      %v2089 = vrot.slane %v2087, 1
      %v2090 = vsel %vm1065, %v2085, %v2089
      %v2092 = vshrl.u32 %v1907, 16
      %v2094 = vshll.u32 %v1907, 16
      %v2096 = vrot.slane %v2094, 1
      %v2097 = vor.u32 %v2092, %v2096
      %v2099 = vshll.u32 %v1987, 16
      %v2101 = vrot.slane %v2099, 1
      %v2102 = vsel %vm1065, %v2097, %v2101
      %v2104 = vshrl.u32 %v1908, 16
      %v2106 = vshll.u32 %v1908, 16
      %v2108 = vrot.slane %v2106, 1
      %v2109 = vor.u32 %v2104, %v2108
      %v2111 = vshll.u32 %v1988, 16
      %v2113 = vrot.slane %v2111, 1
      %v2114 = vsel %vm1065, %v2109, %v2113
      %v2116 = vshrl.u32 %v1909, 16
      %v2118 = vshll.u32 %v1909, 16
      %v2120 = vrot.slane %v2118, 1
      %v2121 = vor.u32 %v2116, %v2120
      %v2123 = vshll.u32 %v1989, 16
      %v2125 = vrot.slane %v2123, 1
      %v2126 = vsel %vm1065, %v2121, %v2125
      %v2128 = vshrl.u32 %v1910, 16
      %v2130 = vshll.u32 %v1910, 16
      %v2132 = vrot.slane %v2130, 1
      %v2133 = vor.u32 %v2128, %v2132
      %v2135 = vshll.u32 %v1990, 16
      %v2137 = vrot.slane %v2135, 1
      %v2138 = vsel %vm1065, %v2133, %v2137
      %v2140 = vshrl.u32 %v1911, 16
      %v2142 = vshll.u32 %v1911, 16
      %v2144 = vrot.slane %v2142, 1
      %v2145 = vor.u32 %v2140, %v2144
      %v2147 = vshll.u32 %v1991, 16
      %v2149 = vrot.slane %v2147, 1
      %v2150 = vsel %vm1065, %v2145, %v2149
      %v2152 = vshrl.u32 %v1912, 16
      %v2154 = vshll.u32 %v1912, 16
      %v2156 = vrot.slane %v2154, 1
      %v2157 = vor.u32 %v2152, %v2156
      %v2159 = vshll.u32 %v1992, 16
      %v2161 = vrot.slane %v2159, 1
      %v2162 = vsel %vm1065, %v2157, %v2161
      %v2164 = vshrl.u32 %v1913, 16
      %v2166 = vshll.u32 %v1913, 16
      %v2168 = vrot.slane %v2166, 1
      %v2169 = vor.u32 %v2164, %v2168
      %v2171 = vshll.u32 %v1993, 16
      %v2173 = vrot.slane %v2171, 1
      %v2174 = vsel %vm1065, %v2169, %v2173
      %v2176 = vshrl.u32 %v1914, 16
      %v2178 = vshll.u32 %v1914, 16
      %v2180 = vrot.slane %v2178, 1
      %v2181 = vor.u32 %v2176, %v2180
      %v2183 = vshll.u32 %v1994, 16
      %v2185 = vrot.slane %v2183, 1
      %v2186 = vsel %vm1065, %v2181, %v2185
      %2187 = vrot.lane.b32.xlu0 %v2006, 28
      %v2188 = vpop.permute.xlu0 %2187
      %2189 = vrot.lane.b32.xlu0 %v2018, 28
      %v2190 = vpop.permute.xlu0 %2189
      %2191 = vrot.lane.b32.xlu0 %v2030, 28
      %v2192 = vpop.permute.xlu0 %2191
      %2193 = vrot.lane.b32.xlu0 %v2042, 28
      %v2194 = vpop.permute.xlu0 %2193
      %2195 = vrot.lane.b32.xlu0 %v2054, 28
      %v2196 = vpop.permute.xlu0 %2195
      %2197 = vrot.lane.b32.xlu0 %v2066, 28
      %v2198 = vpop.permute.xlu0 %2197
      %2199 = vrot.lane.b32.xlu0 %v2078, 28
      %v2200 = vpop.permute.xlu0 %2199
      %2201 = vrot.lane.b32.xlu0 %v2090, 28
      %v2202 = vpop.permute.xlu0 %2201
      %2203 = vrot.lane.b32.xlu0 %v2102, 28
      %v2204 = vpop.permute.xlu0 %2203
      %2205 = vrot.lane.b32.xlu0 %v2114, 28
      %v2206 = vpop.permute.xlu0 %2205
      %2207 = vrot.lane.b32.xlu0 %v2126, 28
      %v2208 = vpop.permute.xlu0 %2207
      %2209 = vrot.lane.b32.xlu0 %v2138, 28
      %v2210 = vpop.permute.xlu0 %2209
      %2211 = vrot.lane.b32.xlu0 %v2150, 28
      %v2212 = vpop.permute.xlu0 %2211
      %2213 = vrot.lane.b32.xlu0 %v2162, 28
      %v2214 = vpop.permute.xlu0 %2213
      %2215 = vrot.lane.b32.xlu0 %v2174, 28
      %v2216 = vpop.permute.xlu0 %2215
      %2217 = vrot.lane.b32.xlu0 %v2186, 28
      %v2218 = vpop.permute.xlu0 %2217
      %v2219 = vrot.slane %v1899, 1
      %v2220 = vrot.slane %v1979, 1
      %v2221 = vsel %vm1290, %v2219, %v2220
      %v2222 = vrot.slane %v1900, 1
      %v2223 = vrot.slane %v1980, 1
      %v2224 = vsel %vm1290, %v2222, %v2223
      %v2225 = vrot.slane %v1901, 1
      %v2226 = vrot.slane %v1981, 1
      %v2227 = vsel %vm1290, %v2225, %v2226
      %v2228 = vrot.slane %v1902, 1
      %v2229 = vrot.slane %v1982, 1
      %v2230 = vsel %vm1290, %v2228, %v2229
      %v2231 = vrot.slane %v1903, 1
      %v2232 = vrot.slane %v1983, 1
      %v2233 = vsel %vm1290, %v2231, %v2232
      %v2234 = vrot.slane %v1904, 1
      %v2235 = vrot.slane %v1984, 1
      %v2236 = vsel %vm1290, %v2234, %v2235
      %v2237 = vrot.slane %v1905, 1
      %v2238 = vrot.slane %v1985, 1
      %v2239 = vsel %vm1290, %v2237, %v2238
      %v2240 = vrot.slane %v1906, 1
      %v2241 = vrot.slane %v1986, 1
      %v2242 = vsel %vm1290, %v2240, %v2241
      %v2243 = vrot.slane %v1907, 1
      %v2244 = vrot.slane %v1987, 1
      %v2245 = vsel %vm1290, %v2243, %v2244
      %v2246 = vrot.slane %v1908, 1
      %v2247 = vrot.slane %v1988, 1
      %v2248 = vsel %vm1290, %v2246, %v2247
      %v2249 = vrot.slane %v1909, 1
      %v2250 = vrot.slane %v1989, 1
      %v2251 = vsel %vm1290, %v2249, %v2250
      %v2252 = vrot.slane %v1910, 1
      %v2253 = vrot.slane %v1990, 1
      %v2254 = vsel %vm1290, %v2252, %v2253
      %v2255 = vrot.slane %v1911, 1
      %v2256 = vrot.slane %v1991, 1
      %v2257 = vsel %vm1290, %v2255, %v2256
      %v2258 = vrot.slane %v1912, 1
      %v2259 = vrot.slane %v1992, 1
      %v2260 = vsel %vm1290, %v2258, %v2259
      %v2261 = vrot.slane %v1913, 1
      %v2262 = vrot.slane %v1993, 1
      %v2263 = vsel %vm1290, %v2261, %v2262
      %v2264 = vrot.slane %v1914, 1
      %v2265 = vrot.slane %v1994, 1
      %v2266 = vsel %vm1290, %v2264, %v2265
      %2267 = vrot.lane.b32.xlu0 %v2221, 32
      %v2268 = vpop.permute.xlu0 %2267
      %2269 = vrot.lane.b32.xlu0 %v2224, 32
      %v2270 = vpop.permute.xlu0 %2269
      %2271 = vrot.lane.b32.xlu0 %v2227, 32
      %v2272 = vpop.permute.xlu0 %2271
      %2273 = vrot.lane.b32.xlu0 %v2230, 32
      %v2274 = vpop.permute.xlu0 %2273
      %2275 = vrot.lane.b32.xlu0 %v2233, 32
      %v2276 = vpop.permute.xlu0 %2275
      %2277 = vrot.lane.b32.xlu0 %v2236, 32
      %v2278 = vpop.permute.xlu0 %2277
      %2279 = vrot.lane.b32.xlu0 %v2239, 32
      %v2280 = vpop.permute.xlu0 %2279
      %2281 = vrot.lane.b32.xlu0 %v2242, 32
      %v2282 = vpop.permute.xlu0 %2281
      %2283 = vrot.lane.b32.xlu0 %v2245, 32
      %v2284 = vpop.permute.xlu0 %2283
      %2285 = vrot.lane.b32.xlu0 %v2248, 32
      %v2286 = vpop.permute.xlu0 %2285
      %2287 = vrot.lane.b32.xlu0 %v2251, 32
      %v2288 = vpop.permute.xlu0 %2287
      %2289 = vrot.lane.b32.xlu0 %v2254, 32
      %v2290 = vpop.permute.xlu0 %2289
      %2291 = vrot.lane.b32.xlu0 %v2257, 32
      %v2292 = vpop.permute.xlu0 %2291
      %2293 = vrot.lane.b32.xlu0 %v2260, 32
      %v2294 = vpop.permute.xlu0 %2293
      %2295 = vrot.lane.b32.xlu0 %v2263, 32
      %v2296 = vpop.permute.xlu0 %2295
      %2297 = vrot.lane.b32.xlu0 %v2266, 32
      %v2298 = vpop.permute.xlu0 %2297
      %vm2299 = vcmask 31744
      %v2301 = vsel %vm2299, %v1001, %v1259
      %v2303 = vsel %vm2299, %v1002, %v1261
      %v2305 = vsel %vm2299, %v1003, %v1263
      %v2307 = vsel %vm2299, %v1004, %v1265
      %v2309 = vsel %vm2299, %v1005, %v1267
      %v2311 = vsel %vm2299, %v1006, %v1269
      %v2313 = vsel %vm2299, %v1007, %v1271
      %v2315 = vsel %vm2299, %v1008, %v1273
      %v2317 = vsel %vm2299, %v1009, %v1275
      %v2319 = vsel %vm2299, %v1010, %v1277
      %v2321 = vsel %vm2299, %v1011, %v1279
      %v2323 = vsel %vm2299, %v1012, %v1281
      %v2325 = vsel %vm2299, %v1013, %v1283
      %v2327 = vsel %vm2299, %v1014, %v1285
      %v2329 = vsel %vm2299, %v1015, %v1287
      %v2331 = vsel %vm2299, %v1016, %v1289
      %vm2332 = vcmask 64512
      %v2334 = vsel %vm2332, %v2301, %v1340
      %v2336 = vsel %vm2332, %v2303, %v1342
      %v2338 = vsel %vm2332, %v2305, %v1344
      %v2340 = vsel %vm2332, %v2307, %v1346
      %v2342 = vsel %vm2332, %v2309, %v1348
      %v2344 = vsel %vm2332, %v2311, %v1350
      %v2346 = vsel %vm2332, %v2313, %v1352
      %v2348 = vsel %vm2332, %v2315, %v1354
      %v2350 = vsel %vm2332, %v2317, %v1356
      %v2352 = vsel %vm2332, %v2319, %v1358
      %v2354 = vsel %vm2332, %v2321, %v1360
      %v2356 = vsel %vm2332, %v2323, %v1362
      %v2358 = vsel %vm2332, %v2325, %v1364
      %v2360 = vsel %vm2332, %v2327, %v1366
      %v2362 = vsel %vm2332, %v2329, %v1368
      %v2364 = vsel %vm2332, %v2331, %v1370
      %vm2365 = vcmask 97280
      %v2367 = vsel %vm2365, %v2334, %v1452
      %v2369 = vsel %vm2365, %v2336, %v1454
      %v2371 = vsel %vm2365, %v2338, %v1456
      %v2373 = vsel %vm2365, %v2340, %v1458
      %v2375 = vsel %vm2365, %v2342, %v1460
      %v2377 = vsel %vm2365, %v2344, %v1462
      %v2379 = vsel %vm2365, %v2346, %v1464
      %v2381 = vsel %vm2365, %v2348, %v1466
      %v2383 = vsel %vm2365, %v2350, %v1468
      %v2385 = vsel %vm2365, %v2352, %v1470
      %v2387 = vsel %vm2365, %v2354, %v1472
      %v2389 = vsel %vm2365, %v2356, %v1474
      %v2391 = vsel %vm2365, %v2358, %v1476
      %v2393 = vsel %vm2365, %v2360, %v1478
      %v2395 = vsel %vm2365, %v2362, %v1480
      %v2397 = vsel %vm2365, %v2364, %v1482
      %vm2398 = vcmask 130048
      %v2400 = vsel %vm2398, %v2367, %v1724
      %v2402 = vsel %vm2398, %v2369, %v1726
      %v2404 = vsel %vm2398, %v2371, %v1728
      %v2406 = vsel %vm2398, %v2373, %v1730
      %v2408 = vsel %vm2398, %v2375, %v1732
      %v2410 = vsel %vm2398, %v2377, %v1734
      %v2412 = vsel %vm2398, %v2379, %v1736
      %v2414 = vsel %vm2398, %v2381, %v1738
      %v2416 = vsel %vm2398, %v2383, %v1740
      %v2418 = vsel %vm2398, %v2385, %v1742
      %v2420 = vsel %vm2398, %v2387, %v1744
      %v2422 = vsel %vm2398, %v2389, %v1746
      %v2424 = vsel %vm2398, %v2391, %v1748
      %v2426 = vsel %vm2398, %v2393, %v1750
      %v2428 = vsel %vm2398, %v2395, %v1752
      %v2430 = vsel %vm2398, %v2397, %v1754
      %vm2431 = vcmask 162816
      %v2433 = vsel %vm2431, %v2400, %v1804
      %v2435 = vsel %vm2431, %v2402, %v1806
      %v2437 = vsel %vm2431, %v2404, %v1808
      %v2439 = vsel %vm2431, %v2406, %v1810
      %v2441 = vsel %vm2431, %v2408, %v1812
      %v2443 = vsel %vm2431, %v2410, %v1814
      %v2445 = vsel %vm2431, %v2412, %v1816
      %v2447 = vsel %vm2431, %v2414, %v1818
      %v2449 = vsel %vm2431, %v2416, %v1820
      %v2451 = vsel %vm2431, %v2418, %v1822
      %v2453 = vsel %vm2431, %v2420, %v1824
      %v2455 = vsel %vm2431, %v2422, %v1826
      %v2457 = vsel %vm2431, %v2424, %v1828
      %v2459 = vsel %vm2431, %v2426, %v1830
      %v2461 = vsel %vm2431, %v2428, %v1832
      %v2463 = vsel %vm2431, %v2430, %v1834
      %vm2464 = vcmask 195584
      %v2466 = vsel %vm2464, %v2433, %v1916
      %v2468 = vsel %vm2464, %v2435, %v1918
      %v2470 = vsel %vm2464, %v2437, %v1920
      %v2472 = vsel %vm2464, %v2439, %v1922
      %v2474 = vsel %vm2464, %v2441, %v1924
      %v2476 = vsel %vm2464, %v2443, %v1926
      %v2478 = vsel %vm2464, %v2445, %v1928
      %v2480 = vsel %vm2464, %v2447, %v1930
      %v2482 = vsel %vm2464, %v2449, %v1932
      %v2484 = vsel %vm2464, %v2451, %v1934
      %v2486 = vsel %vm2464, %v2453, %v1936
      %v2488 = vsel %vm2464, %v2455, %v1938
      %v2490 = vsel %vm2464, %v2457, %v1940
      %v2492 = vsel %vm2464, %v2459, %v1942
      %v2494 = vsel %vm2464, %v2461, %v1944
      %v2496 = vsel %vm2464, %v2463, %v1946
      %vm2497 = vcmask 228352
      %v2499 = vsel %vm2497, %v2466, %v2188
      %v2501 = vsel %vm2497, %v2468, %v2190
      %v2503 = vsel %vm2497, %v2470, %v2192
      %v2505 = vsel %vm2497, %v2472, %v2194
      %v2507 = vsel %vm2497, %v2474, %v2196
      %v2509 = vsel %vm2497, %v2476, %v2198
      %v2511 = vsel %vm2497, %v2478, %v2200
      %v2513 = vsel %vm2497, %v2480, %v2202
      %v2515 = vsel %vm2497, %v2482, %v2204
      %v2517 = vsel %vm2497, %v2484, %v2206
      %v2519 = vsel %vm2497, %v2486, %v2208
      %v2521 = vsel %vm2497, %v2488, %v2210
      %v2523 = vsel %vm2497, %v2490, %v2212
      %v2525 = vsel %vm2497, %v2492, %v2214
      %v2527 = vsel %vm2497, %v2494, %v2216
      %v2529 = vsel %vm2497, %v2496, %v2218
      %vm2530 = vcmask 261120
      %v2532 = vsel %vm2530, %v2499, %v2268
      %v2534 = vsel %vm2530, %v2501, %v2270
      %v2536 = vsel %vm2530, %v2503, %v2272
      %v2538 = vsel %vm2530, %v2505, %v2274
      %v2540 = vsel %vm2530, %v2507, %v2276
      %v2542 = vsel %vm2530, %v2509, %v2278
      %v2544 = vsel %vm2530, %v2511, %v2280
      %v2546 = vsel %vm2530, %v2513, %v2282
      %v2548 = vsel %vm2530, %v2515, %v2284
      %v2550 = vsel %vm2530, %v2517, %v2286
      %v2552 = vsel %vm2530, %v2519, %v2288
      %v2554 = vsel %vm2530, %v2521, %v2290
      %v2556 = vsel %vm2530, %v2523, %v2292
      %v2558 = vsel %vm2530, %v2525, %v2294
      %v2560 = vsel %vm2530, %v2527, %v2296
      %v2562 = vsel %vm2530, %v2529, %v2298
      %v2563 = vld [vmem:[%s1] sm:$0xf]
      %v2564 = vld [vmem:[%s1 + $0x4] sm:$0xf]
      %v2565 = vld [vmem:[%s1 + $0x8] sm:$0xf]
      %v2566 = vld [vmem:[%s1 + $0xc] sm:$0xf]
      %v2567 = vld [vmem:[%s1 + $0x10] sm:$0x3]
      %v2573 = vunpack.c.l.b16 %v2563
      %v2574 = vunpack.c.l.b16 %v2564
      %v2575 = vunpack.c.l.b16 %v2565
      %v2576 = vunpack.c.l.b16 %v2566
      %v2577 = vunpack.c.l.b16 %v2567
      %v2578 = vpack.c.b16 %v2574, %v2573
      %v2579 = vpack.c.b16 %v2576, %v2575
      %v2580 = vpack.c.b16 %v2577, %v2577
      %vm2583 = vcmask 293888
      %v2584 = vsel %vm2583, %v2532, 0
      %v2586 = vsel %vm2583, %v2534, 0
      %v2588 = vsel %vm2583, %v2536, 0
      %v2590 = vsel %vm2583, %v2538, 0
      %v2592 = vsel %vm2583, %v2540, 0
      %v2594 = vsel %vm2583, %v2542, 0
      %v2596 = vsel %vm2583, %v2544, 0
      %v2598 = vsel %vm2583, %v2546, 0
      %v2600 = vsel %vm2583, %v2548, 0
      %v2602 = vsel %vm2583, %v2550, 0
      %v2604 = vsel %vm2583, %v2552, 0
      %v2606 = vsel %vm2583, %v2554, 0
      %v2608 = vsel %vm2583, %v2556, 0
      %v2610 = vsel %vm2583, %v2558, 0
      %v2612 = vsel %vm2583, %v2560, 0
      %v2614 = vsel %vm2583, %v2562, 0
      %vm2616 = vcmask 1041408
      %v2618 = vsel %vm2616, %v2580, 0
      %2620 = vmatpush.bf16.msra.mxu0 0
      %2621 = vmatpush.bf16.msra.mxu0 0
      %2622 = vmatpush.bf16.msra.mxu0 0
      %2623 = vmatpush.bf16.msra.mxu0 0
      %2624 = vmatpush.bf16.msra.mxu0 0
      %2625 = vmatpush.bf16.msra.mxu0 %v2618
      %2626 = vmatpush.bf16.msra.mxu0 %v2579
      %2627 = vmatpush.bf16.msra.mxu0 %v2578
      %2628 = vmatmul.bf16.gmra.mxu0 %v2584
      %v2629 = vpop.f32.mrf.mxu0
      %v2630 = vadd.f32 0.0, %v2629
      %v2631 = vpop.f32.mrf.mxu0
      %v2632 = vadd.f32 0.0, %v2631
      %2633 = vmatmul.bf16.gmra.mxu0 %v2586
      %v2634 = vpop.f32.mrf.mxu0
      %v2635 = vadd.f32 0.0, %v2634
      %v2636 = vpop.f32.mrf.mxu0
      %v2637 = vadd.f32 0.0, %v2636
      %2638 = vmatmul.bf16.gmra.mxu0 %v2588
      %v2639 = vpop.f32.mrf.mxu0
      %v2640 = vadd.f32 0.0, %v2639
      %v2641 = vpop.f32.mrf.mxu0
      %v2642 = vadd.f32 0.0, %v2641
      %2643 = vmatmul.bf16.gmra.mxu0 %v2590
      %v2644 = vpop.f32.mrf.mxu0
      %v2645 = vadd.f32 0.0, %v2644
      %v2646 = vpop.f32.mrf.mxu0
      %v2647 = vadd.f32 0.0, %v2646
      %2648 = vmatmul.bf16.gmra.mxu0 %v2592
      %v2649 = vpop.f32.mrf.mxu0
      %v2650 = vadd.f32 0.0, %v2649
      %v2651 = vpop.f32.mrf.mxu0
      %v2652 = vadd.f32 0.0, %v2651
      %2653 = vmatmul.bf16.gmra.mxu0 %v2594
      %v2654 = vpop.f32.mrf.mxu0
      %v2655 = vadd.f32 0.0, %v2654
      %v2656 = vpop.f32.mrf.mxu0
      %v2657 = vadd.f32 0.0, %v2656
      %2658 = vmatmul.bf16.gmra.mxu0 %v2596
      %v2659 = vpop.f32.mrf.mxu0
      %v2660 = vadd.f32 0.0, %v2659
      %v2661 = vpop.f32.mrf.mxu0
      %v2662 = vadd.f32 0.0, %v2661
      %2663 = vmatmul.bf16.gmra.mxu0 %v2598
      %v2664 = vpop.f32.mrf.mxu0
      %v2665 = vadd.f32 0.0, %v2664
      %v2666 = vpop.f32.mrf.mxu0
      %v2667 = vadd.f32 0.0, %v2666
      %2668 = vmatmul.bf16.gmra.mxu0 %v2600
      %v2669 = vpop.f32.mrf.mxu0
      %v2670 = vadd.f32 0.0, %v2669
      %v2671 = vpop.f32.mrf.mxu0
      %v2672 = vadd.f32 0.0, %v2671
      %2673 = vmatmul.bf16.gmra.mxu0 %v2602
      %v2674 = vpop.f32.mrf.mxu0
      %v2675 = vadd.f32 0.0, %v2674
      %v2676 = vpop.f32.mrf.mxu0
      %v2677 = vadd.f32 0.0, %v2676
      %2678 = vmatmul.bf16.gmra.mxu0 %v2604
      %v2679 = vpop.f32.mrf.mxu0
      %v2680 = vadd.f32 0.0, %v2679
      %v2681 = vpop.f32.mrf.mxu0
      %v2682 = vadd.f32 0.0, %v2681
      %2683 = vmatmul.bf16.gmra.mxu0 %v2606
      %v2684 = vpop.f32.mrf.mxu0
      %v2685 = vadd.f32 0.0, %v2684
      %v2686 = vpop.f32.mrf.mxu0
      %v2687 = vadd.f32 0.0, %v2686
      %2688 = vmatmul.bf16.gmra.mxu0 %v2608
      %v2689 = vpop.f32.mrf.mxu0
      %v2690 = vadd.f32 0.0, %v2689
      %v2691 = vpop.f32.mrf.mxu0
      %v2692 = vadd.f32 0.0, %v2691
      %2693 = vmatmul.bf16.gmra.mxu0 %v2610
      %v2694 = vpop.f32.mrf.mxu0
      %v2695 = vadd.f32 0.0, %v2694
      %v2696 = vpop.f32.mrf.mxu0
      %v2697 = vadd.f32 0.0, %v2696
      %2698 = vmatmul.bf16.gmra.mxu0 %v2612
      %v2699 = vpop.f32.mrf.mxu0
      %v2700 = vadd.f32 0.0, %v2699
      %v2701 = vpop.f32.mrf.mxu0
      %v2702 = vadd.f32 0.0, %v2701
      %2703 = vmatmul.bf16.gmra.mxu0 %v2614
      %v2704 = vpop.f32.mrf.mxu0
      %v2705 = vadd.f32 0.0, %v2704
      %v2706 = vpop.f32.mrf.mxu0
      %v2707 = vadd.f32 0.0, %v2706
      %2708 = vdwg.mxu0
      %v2709 = vpack.c.bf16 %v2630, %v2630
      %v2710 = vpack.c.bf16 %v2632, %v2632
      %v2711 = vpack.c.bf16 %v2635, %v2635
      %v2712 = vpack.c.bf16 %v2637, %v2637
      %v2713 = vpack.c.bf16 %v2640, %v2640
      %v2714 = vpack.c.bf16 %v2642, %v2642
      %v2715 = vpack.c.bf16 %v2645, %v2645
      %v2716 = vpack.c.bf16 %v2647, %v2647
      %v2717 = vpack.c.bf16 %v2650, %v2650
      %v2718 = vpack.c.bf16 %v2652, %v2652
      %v2719 = vpack.c.bf16 %v2655, %v2655
      %v2720 = vpack.c.bf16 %v2657, %v2657
      %v2721 = vpack.c.bf16 %v2660, %v2660
      %v2722 = vpack.c.bf16 %v2662, %v2662
      %v2723 = vpack.c.bf16 %v2665, %v2665
      %v2724 = vpack.c.bf16 %v2667, %v2667
      %v2725 = vpack.c.bf16 %v2670, %v2670
      %v2726 = vpack.c.bf16 %v2672, %v2672
      %v2727 = vpack.c.bf16 %v2675, %v2675
      %v2728 = vpack.c.bf16 %v2677, %v2677
      %v2729 = vpack.c.bf16 %v2680, %v2680
      %v2730 = vpack.c.bf16 %v2682, %v2682
      %v2731 = vpack.c.bf16 %v2685, %v2685
      %v2732 = vpack.c.bf16 %v2687, %v2687
      %v2733 = vpack.c.bf16 %v2690, %v2690
      %v2734 = vpack.c.bf16 %v2692, %v2692
      %v2735 = vpack.c.bf16 %v2695, %v2695
      %v2736 = vpack.c.bf16 %v2697, %v2697
      %v2737 = vpack.c.bf16 %v2700, %v2700
      %v2738 = vpack.c.bf16 %v2702, %v2702
      %v2739 = vpack.c.bf16 %v2705, %v2705
      %v2740 = vpack.c.bf16 %v2707, %v2707
      %2741 = vst [vmem:[%s206] sm:$0xf] %v2709
      %2742 = vst [vmem:[%s206 + $0x4] sm:$0xf] %v2710
      %2743 = vst [vmem:[%s206 + $0x8] sm:$0xf] %v2711
      %2744 = vst [vmem:[%s206 + $0xc] sm:$0xf] %v2712
      %2745 = vst [vmem:[%s206 + $0x10] sm:$0xf] %v2713
      %2746 = vst [vmem:[%s206 + $0x14] sm:$0xf] %v2714
      %2747 = vst [vmem:[%s206 + $0x18] sm:$0xf] %v2715
      %2748 = vst [vmem:[%s206 + $0x1c] sm:$0xf] %v2716
      %2749 = vst [vmem:[%s206 + $0x20] sm:$0xf] %v2717
      %2750 = vst [vmem:[%s206 + $0x24] sm:$0xf] %v2718
      %2751 = vst [vmem:[%s206 + $0x28] sm:$0xf] %v2719
      %2752 = vst [vmem:[%s206 + $0x2c] sm:$0xf] %v2720
      %2753 = vst [vmem:[%s206 + $0x30] sm:$0xf] %v2721
      %2754 = vst [vmem:[%s206 + $0x34] sm:$0xf] %v2722
      %2755 = vst [vmem:[%s206 + $0x38] sm:$0xf] %v2723
      %2756 = vst [vmem:[%s206 + $0x3c] sm:$0xf] %v2724
      %2757 = vst [vmem:[%s206 + $0x40] sm:$0xf] %v2725
      %2758 = vst [vmem:[%s206 + $0x44] sm:$0xf] %v2726
      %2759 = vst [vmem:[%s206 + $0x48] sm:$0xf] %v2727
      %2760 = vst [vmem:[%s206 + $0x4c] sm:$0xf] %v2728
      %2761 = vst [vmem:[%s206 + $0x50] sm:$0xf] %v2729
      %2762 = vst [vmem:[%s206 + $0x54] sm:$0xf] %v2730
      %2763 = vst [vmem:[%s206 + $0x58] sm:$0xf] %v2731
      %2764 = vst [vmem:[%s206 + $0x5c] sm:$0xf] %v2732
      %2765 = vst [vmem:[%s206 + $0x60] sm:$0xf] %v2733
      %2766 = vst [vmem:[%s206 + $0x64] sm:$0xf] %v2734
      %2767 = vst [vmem:[%s206 + $0x68] sm:$0xf] %v2735
      %2768 = vst [vmem:[%s206 + $0x6c] sm:$0xf] %v2736
      %2769 = vst [vmem:[%s206 + $0x70] sm:$0xf] %v2737
      %2770 = vst [vmem:[%s206 + $0x74] sm:$0xf] %v2738
      %2771 = vst [vmem:[%s206 + $0x78] sm:$0xf] %v2739
      %2772 = vst [vmem:[%s206 + $0x7c] sm:$0xf] %v2740
      %v2773 = vadd.f32 %v2630, %v2632
      %v2774 = vadd.f32 %v2773, %v2635
      %v2775 = vadd.f32 %v2774, %v2637
      %v2776 = vadd.f32 %v2775, %v2640
      %v2777 = vadd.f32 %v2776, %v2642
      %v2778 = vadd.f32 %v2777, %v2645
      %v2779 = vadd.f32 %v2778, %v2647
      %v2780 = vadd.f32 %v2779, %v2650
      %v2781 = vadd.f32 %v2780, %v2652
      %v2782 = vadd.f32 %v2781, %v2655
      %v2783 = vadd.f32 %v2782, %v2657
      %v2784 = vadd.f32 %v2783, %v2660
      %v2785 = vadd.f32 %v2784, %v2662
      %v2786 = vadd.f32 %v2785, %v2665
      %v2787 = vadd.f32 %v2786, %v2667
      %v2788 = vadd.f32 %v2787, %v2670
      %v2789 = vadd.f32 %v2788, %v2672
      %v2790 = vadd.f32 %v2789, %v2675
      %v2791 = vadd.f32 %v2790, %v2677
      %v2792 = vadd.f32 %v2791, %v2680
      %v2793 = vadd.f32 %v2792, %v2682
      %v2794 = vadd.f32 %v2793, %v2685
      %v2795 = vadd.f32 %v2794, %v2687
      %v2796 = vadd.f32 %v2795, %v2690
      %v2797 = vadd.f32 %v2796, %v2692
      %v2798 = vadd.f32 %v2797, %v2695
      %v2799 = vadd.f32 %v2798, %v2697
      %v2800 = vadd.f32 %v2799, %v2700
      %v2801 = vadd.f32 %v2800, %v2702
      %v2802 = vadd.f32 %v2801, %v2705
      %v2803 = vadd.f32 %v2802, %v2707
      %v2804 = vrot.slane %v2803, 4
      %v2805 = vadd.f32 %v2803, %v2804
      %v2806 = vrot.slane %v2805, 2
      %v2807 = vadd.f32 %v2805, %v2806
      %v2808 = vrot.slane %v2807, 1
      %v2809 = vadd.f32 %v2807, %v2808
      %v2810 = vmul.f32 %v2630, %v2630
      %v2811 = vmul.f32 %v2632, %v2632
      %v2812 = vmul.f32 %v2635, %v2635
      %v2813 = vmul.f32 %v2637, %v2637
      %v2814 = vmul.f32 %v2640, %v2640
      %v2815 = vmul.f32 %v2642, %v2642
      %v2816 = vmul.f32 %v2645, %v2645
      %v2817 = vmul.f32 %v2647, %v2647
      %v2818 = vmul.f32 %v2650, %v2650
      %v2819 = vmul.f32 %v2652, %v2652
      %v2820 = vmul.f32 %v2655, %v2655
      %v2821 = vmul.f32 %v2657, %v2657
      %v2822 = vmul.f32 %v2660, %v2660
      %v2823 = vmul.f32 %v2662, %v2662
      %v2824 = vmul.f32 %v2665, %v2665
      %v2825 = vmul.f32 %v2667, %v2667
      %v2826 = vmul.f32 %v2670, %v2670
      %v2827 = vmul.f32 %v2672, %v2672
      %v2828 = vmul.f32 %v2675, %v2675
      %v2829 = vmul.f32 %v2677, %v2677
      %v2830 = vmul.f32 %v2680, %v2680
      %v2831 = vmul.f32 %v2682, %v2682
      %v2832 = vmul.f32 %v2685, %v2685
      %v2833 = vmul.f32 %v2687, %v2687
      %v2834 = vmul.f32 %v2690, %v2690
      %v2835 = vmul.f32 %v2692, %v2692
      %v2836 = vmul.f32 %v2695, %v2695
      %v2837 = vmul.f32 %v2697, %v2697
      %v2838 = vmul.f32 %v2700, %v2700
      %v2839 = vmul.f32 %v2702, %v2702
      %v2840 = vmul.f32 %v2705, %v2705
      %v2841 = vmul.f32 %v2707, %v2707
      %v2842 = vadd.f32 %v2810, %v2811
      %v2843 = vadd.f32 %v2842, %v2812
      %v2844 = vadd.f32 %v2843, %v2813
      %v2845 = vadd.f32 %v2844, %v2814
      %v2846 = vadd.f32 %v2845, %v2815
      %v2847 = vadd.f32 %v2846, %v2816
      %v2848 = vadd.f32 %v2847, %v2817
      %v2849 = vadd.f32 %v2848, %v2818
      %v2850 = vadd.f32 %v2849, %v2819
      %v2851 = vadd.f32 %v2850, %v2820
      %v2852 = vadd.f32 %v2851, %v2821
      %v2853 = vadd.f32 %v2852, %v2822
      %v2854 = vadd.f32 %v2853, %v2823
      %v2855 = vadd.f32 %v2854, %v2824
      %v2856 = vadd.f32 %v2855, %v2825
      %v2857 = vadd.f32 %v2856, %v2826
      %v2858 = vadd.f32 %v2857, %v2827
      %v2859 = vadd.f32 %v2858, %v2828
      %v2860 = vadd.f32 %v2859, %v2829
      %v2861 = vadd.f32 %v2860, %v2830
      %v2862 = vadd.f32 %v2861, %v2831
      %v2863 = vadd.f32 %v2862, %v2832
      %v2864 = vadd.f32 %v2863, %v2833
      %v2865 = vadd.f32 %v2864, %v2834
      %v2866 = vadd.f32 %v2865, %v2835
      %v2867 = vadd.f32 %v2866, %v2836
      %v2868 = vadd.f32 %v2867, %v2837
      %v2869 = vadd.f32 %v2868, %v2838
      %v2870 = vadd.f32 %v2869, %v2839
      %v2871 = vadd.f32 %v2870, %v2840
      %v2872 = vadd.f32 %v2871, %v2841
      %v2873 = vrot.slane %v2872, 4
      %v2874 = vadd.f32 %v2872, %v2873
      %v2875 = vrot.slane %v2874, 2
      %v2876 = vadd.f32 %v2874, %v2875
      %v2877 = vrot.slane %v2876, 1
      %v2878 = vadd.f32 %v2876, %v2877
      %vm2879 = vcmask 1040384
      %v2880 = vsel %vm2879, %v2809, %v2878
      %2881 = vst [vmem:[%s214] sm:$0x3] %v2880
      %s2882 = smul.u32 16, %s20
      %p2883 = scmp.lt.s32.totalorder %s19, 1
      %s2884 = scalar_select %p2883, %s19, 1
      %p2885 = scmp.lt.s32.totalorder %s2882, 15
      %s2886 = scalar_select %p2885, %s2882, 15
      %s2887 = smul.addr %s2886, 2
      %s2888 = smul.addr %s2884, 32
      %s2889 = sadd.s32 %s2887, %s2888
      %s2890 = smul.addr %s2889, 4
      %s2891 = scalar_lea.vmem %s2, %s2890
      %p2892 = scmp.lt.s32.totalorder %s19, 1
      %s2893 = scalar_select %p2892, %s19, 1
      %p2894 = scmp.lt.s32.totalorder %s20, 0
      %s2895 = scalar_select %p2894, %s20, 0
      %s2896 = sadd.s32 %s2895, %s2893
      %s2897 = smul.addr %s2896, 2
      %s2898 = scalar_lea.vmem %s3, %s2897
      // Predicated region
      $region33: #{conv_bn_relu.2} parent=27 // pred_check
        %p2899 = pneg %p94
      $region34: #{conv_bn_relu.2} parent=27 // pred_check_branch
        %2901 = sbr.rel (%p2899) target = $region36
      $region35: #{conv_bn_relu.2} parent=27 // pred_region
        %s2902 = smul.u32 16, %s20
      $region36: #{conv_bn_relu.2} parent=27 // pred_fallthru
        _
      // Predicated region
      $region37: #{conv_bn_relu.2} parent=27 // pred_check
        %p2903 = pneg %p122
      $region38: #{conv_bn_relu.2} parent=27 // pred_check_branch
        %2905 = sbr.rel (%p2903) target = $region40
      $region39: #{conv_bn_relu.2} parent=27 // pred_region
        _
      $region40: #{conv_bn_relu.2} parent=27 // pred_fallthru
        _
    $region28: #{conv_bn_relu.2} parent=5 // pred_fallthru
      _
    %p2906 = scmp.le.s32.totalorder 2, %s10
    // Predicated region
    $region41: #{conv_bn_relu.2} parent=5 // pred_check
      %p2907 = pneg %p2906
    $region42: #{conv_bn_relu.2} parent=5 // pred_check_branch
      %2909 = sbr.rel (%p2907) target = $region44
    $region43: #{conv_bn_relu.2} parent=5 // pred_region
      %s2910 = ssub.s32 %s10, 2
      // Predicated region
      $region45: #{conv_bn_relu.2} parent=43 // pred_check
        %p2911 = pneg %p100
      $region46: #{conv_bn_relu.2} parent=43 // pred_check_branch
        %2913 = sbr.rel (%p2911) target = $region48
      $region47: #{conv_bn_relu.2} parent=43 // pred_region
        %s2914 = smul.u32 16, %s22
        %p2915 = scmp.lt.s32.totalorder %s21, 1
        %s2916 = scalar_select %p2915, %s21, 1
        %p2917 = scmp.lt.s32.totalorder %s2914, 15
        %s2918 = scalar_select %p2917, %s2914, 15
        %s2919 = smul.addr %s2918, 2
        %s2920 = smul.addr %s2916, 32
        %s2921 = sadd.s32 %s2919, %s2920
        %s2922 = smul.addr %s2921, 4
        %s2923 = scalar_lea.vmem %s2, %s2922
      $region48: #{conv_bn_relu.2} parent=43 // pred_fallthru
        _
      // Predicated region
      $region49: #{conv_bn_relu.2} parent=43 // pred_check
        %p2924 = pneg %p128
      $region50: #{conv_bn_relu.2} parent=43 // pred_check_branch
        %2926 = sbr.rel (%p2924) target = $region52
      $region51: #{conv_bn_relu.2} parent=43 // pred_region
        %p2927 = scmp.lt.s32.totalorder %s21, 1
        %s2928 = scalar_select %p2927, %s21, 1
        %p2929 = scmp.lt.s32.totalorder %s22, 0
        %s2930 = scalar_select %p2929, %s22, 0
        %s2931 = sadd.s32 %s2930, %s2928
        %s2932 = smul.addr %s2931, 2
        %s2933 = scalar_lea.vmem %s3, %s2932
      $region52: #{conv_bn_relu.2} parent=43 // pred_fallthru
        _
    $region44: #{conv_bn_relu.2} parent=5 // pred_fallthru
      _
  $region6: #{conv_bn_relu.2} parent=0 // loop_footer
    %s14 = sadd.s32 1, %s10
  $region7: #{conv_bn_relu.2} parent=0 // loop_footer_branch
    %9 = sbr.rel target = $region3
  $region8: #{conv_bn_relu.2} parent=0 // loop_exit
    _

</llo_original>
